<compile_context>
chip_gen: v7x
topology: tpu7x:2x2x1
jax: 0.10.0
libtpu: 0.0.40
codegen_flags: <defaults>
</compile_context>

<pallas_src>
import functools

import jax
import jax.numpy as jnp
from jax import lax
from jax.experimental import pallas as pl
from jax.experimental.pallas import tpu as pltpu


# ----------------------------- Fused Pallas kernel ---------------------------

def _tcn_fused_kernel(x_ref, w_ref, b_ref, o_ref, *,
                      K, T, B, c_pad, dilations, has_ds, out_dim):
    """Whole-network TCN forward, whole batch in one invocation.

    x_ref : (B, T, c_pad) f32   input, channels zero-padded to c_pad lanes
    w_ref : (n_mats*c_pad, c_pad) bf16   packed per-tap weight matrices
    b_ref : (n_biases, c_pad) f32        packed bias rows
    o_ref : (B, out_dim) f32             final-linear output (last timestep)
    """
    BT = B * T
    h = x_ref[...].reshape(BT, c_pad)  # fold batch into matmul M rows (f32)

    # Intra-batch time index of every folded row (hoisted once, reused by all
    # causal masks; T is a static power of two here so % is cheap).
    t_idx = lax.broadcasted_iota(jnp.int32, (BT, c_pad), 0) % T

    # Static cursors into the packed weight / bias buffers.  Pull order must
    # match pack_params(): per block [conv1 taps, (downsample), conv2 taps],
    # then the final linear.
    cur = {"w": 0, "b": 0}

    def next_w():
        off = cur["w"]; cur["w"] = off + c_pad
        return w_ref[off:off + c_pad, :]          # (c_pad, c_pad) bf16

    def next_b():
        off = cur["b"]; cur["b"] = off + 1
        return b_ref[off:off + 1, :]              # (1, c_pad) f32

    def shifted(xb, s):
        # Tap input: row r -> xb[r - s]; rows whose intra-batch time < s are
        # zeroed (per-batch causal zero halo; prevents cross-batch leakage).
        if s == 0:
            return xb
        moved = jnp.concatenate(
            [jnp.zeros((s, c_pad), xb.dtype), xb[:BT - s, :]], axis=0)
        return jnp.where(t_idx >= s, moved, jnp.zeros_like(moved))

    def causal_conv(h_f32, k, d):
        # Dilated causal conv (+chomp) as k accumulated MXU dots against
        # per-tap weight slices -- no lane-axis im2col concatenation.
        xb = h_f32.astype(jnp.bfloat16)
        acc = jnp.zeros((BT, c_pad), jnp.float32)
        for j in range(k):
            w_tap = next_w()
            s = (k - 1 - j) * d
            if s >= T:
                continue  # tap lies entirely inside the causal zero padding
            acc = acc + jnp.dot(shifted(xb, s), w_tap,
                                preferred_element_type=jnp.float32)
        return acc + next_b()

    for i, d in enumerate(dilations):
        # conv1 -> chomp -> ReLU
        # TODO(synk): nn.Dropout omitted (inference-mode identity).
        out1 = jnp.maximum(causal_conv(h, K, d), 0.0)
        # residual branch (1x1 downsample when channel count changes)
        res = causal_conv(h, 1, 1) if has_ds[i] else h
        # conv2 -> chomp -> ReLU, then residual add + ReLU
        out2 = jnp.maximum(causal_conv(out1, K, d), 0.0)
        h = jnp.maximum(out2 + res, 0.0)

    # Final Linear on the LAST timestep of each batch element only
    # (slice BEFORE the dot).
    last = jnp.concatenate(
        [h[(b + 1) * T - 1:(b + 1) * T, :] for b in range(B)], axis=0)  # (B, c_pad)
    y = jnp.dot(last.astype(jnp.bfloat16), next_w(),
                preferred_element_type=jnp.float32) + next_b()
    o_ref[...] = y[:, :out_dim].astype(o_ref.dtype)


# --------------------------------- Wrapper ------------------------------------

@functools.partial(jax.jit, static_argnames=(
    "kernel_size", "num_levels", "has_ds", "c_pad", "out_dim"))
def tcn_forward(x_ncw, w_packed, b_packed, *, kernel_size, num_levels, has_ds,
                c_pad, out_dim):
    """x_ncw: (B, C_in, T) NCW like PyTorch. Returns (B, out_dim) f32."""
    B, C_in, T = x_ncw.shape
    # NCW -> NTC (time on sublanes, channels on lanes); keep f32 (cast to bf16
    # happens inside the kernel); zero-pad channels to the common lane width.
    x = jnp.transpose(x_ncw, (0, 2, 1))
    x = jnp.pad(x, ((0, 0), (0, 0), (0, c_pad - C_in)))
    dilations = tuple(2 ** i for i in range(num_levels))

    kernel = functools.partial(
        _tcn_fused_kernel, K=kernel_size, T=T, B=B, c_pad=c_pad,
        dilations=dilations, has_ds=tuple(has_ds), out_dim=out_dim)

    # Single invocation (no grid): whole problem (<100 KB) sits in VMEM.
    # NOTE(scaling): on v7x (64 MiB VMEM) re-budget before scaling T/C up and
    # re-introduce a "parallel" batch-tile grid axis for large B.
    return pl.pallas_call(
        kernel,
        out_shape=jax.ShapeDtypeStruct((B, out_dim), jnp.float32),
        in_specs=[pl.BlockSpec(memory_space=pltpu.MemorySpace.VMEM)] * 3,
        out_specs=pl.BlockSpec(memory_space=pltpu.MemorySpace.VMEM),
    )(x, w_packed, b_packed)


# ------------------------------ Parameters ------------------------------------

def init_params(key, input_size, output_size, num_channels, kernel_size):
    """Synthetic per-tap conv weights (f32, true shapes) for each TemporalBlock."""
    blocks = []
    ch_in = input_size
    for ch_out in num_channels:
        key, k1, k2, k3, k4, k5, k6 = jax.random.split(key, 7)
        blk = dict(
            w1=0.1 * jax.random.normal(k1, (kernel_size, ch_in, ch_out), jnp.float32),
            b1=0.1 * jax.random.normal(k2, (ch_out,), jnp.float32),
            w2=0.1 * jax.random.normal(k3, (kernel_size, ch_out, ch_out), jnp.float32),
            b2=0.1 * jax.random.normal(k4, (ch_out,), jnp.float32),
        )
        if ch_in != ch_out:  # 1x1 downsample on the residual path
            blk["wd"] = 0.1 * jax.random.normal(k5, (ch_in, ch_out), jnp.float32)
            blk["bd"] = 0.1 * jax.random.normal(k6, (ch_out,), jnp.float32)
        blocks.append(blk)
        ch_in = ch_out
    key, kf1, kf2 = jax.random.split(key, 3)
    head = (0.1 * jax.random.normal(kf1, (ch_in, output_size), jnp.float32),
            0.1 * jax.random.normal(kf2, (output_size,), jnp.float32))
    return blocks, head


def pack_params(blocks, head, c_pad):
    """Pack every tap matrix into ONE bf16 buffer (stack of (c_pad, c_pad)
    zero-padded matrices) and every bias into ONE f32 (n, c_pad) buffer.
    Order matches the kernel pull order: per block conv1 taps, (downsample),
    conv2 taps; then the final linear."""
    mats, rows = [], []

    def add_mat(w):  # w: (c_in, c_out) f32
        m = jnp.zeros((c_pad, c_pad), jnp.float32)
        mats.append(m.at[:w.shape[0], :w.shape[1]].set(w))

    def add_bias(b):  # b: (c_out,) f32
        rows.append(jnp.zeros((c_pad,), jnp.float32).at[:b.shape[0]].set(b))

    for blk in blocks:
        for w in blk["w1"]:
            add_mat(w)
        add_bias(blk["b1"])
        if "wd" in blk:
            add_mat(blk["wd"])
            add_bias(blk["bd"])
        for w in blk["w2"]:
            add_mat(w)
        add_bias(blk["b2"])
    add_mat(head[0])
    add_bias(head[1])

    w_packed = jnp.concatenate(mats, axis=0).astype(jnp.bfloat16)
    b_packed = jnp.stack(rows, axis=0)
    return w_packed, b_packed


# -------------------- Pure-JAX reference (same math, no Pallas) ---------------

def _ref_forward(x_ncw, blocks, head, kernel_size):
    x = jnp.transpose(x_ncw, (0, 2, 1))  # (B, T, C) f32
    T = x.shape[1]

    def conv(h, w_taps, b, d):
        k = w_taps.shape[0]
        hb = h.astype(jnp.bfloat16)
        acc = jnp.zeros(h.shape[:2] + (w_taps.shape[2],), jnp.float32)
        for j in range(k):
            s = (k - 1 - j) * d
            xs = jnp.pad(hb, ((0, 0), (s, 0), (0, 0)))[:, :T, :] if s else hb
            acc = acc + jnp.einsum("btc,co->bto", xs,
                                   w_taps[j].astype(jnp.bfloat16),
                                   preferred_element_type=jnp.float32)
        return acc + b

    h = x
    for i, blk in enumerate(blocks):
        d = 2 ** i
        out1 = jnp.maximum(conv(h, blk["w1"], blk["b1"], d), 0.0)
        res = conv(h, blk["wd"][None], blk["bd"], 1) if "wd" in blk else h
        out2 = jnp.maximum(conv(out1, blk["w2"], blk["b2"], d), 0.0)
        h = jnp.maximum(out2 + res, 0.0)

    hw, hb = head
    last = h[:, -1, :]
    return jnp.dot(last.astype(jnp.bfloat16), hw.astype(jnp.bfloat16),
                   preferred_element_type=jnp.float32) + hb


# ------------------------------------ Main -------------------------------------

if __name__ == "__main__":
    # Small shapes: batch=2, input_size=4, seq_len=16, hidden [8, 8, 16], out=3
    B, input_size, T = 2, 4, 16
    num_channels = [8, 8, 16]      # exercises both downsample / identity residuals
    kernel_size = 3
    output_size = 3

    # Common lane width for all channel dims (multiple of 8, >= every channel count).
    c_max = max([input_size, output_size] + num_channels)
    c_pad = max(8, -(-c_max // 8) * 8)

    key = jax.random.PRNGKey(0)
    key, kx = jax.random.split(key)
    x = jax.random.normal(kx, (B, input_size, T), jnp.float32)   # NCW, like PyTorch

    blocks, head = init_params(key, input_size, output_size, num_channels,
                               kernel_size)
    w_packed, b_packed = pack_params(blocks, head, c_pad)
    has_ds = tuple("wd" in blk for blk in blocks)

    out = tcn_forward(x, w_packed, b_packed, kernel_size=kernel_size,
                      num_levels=len(num_channels), has_ds=has_ds,
                      c_pad=c_pad, out_dim=output_size)
    out = jax.block_until_ready(out)

    ref = _ref_forward(x, blocks, head, kernel_size)
    assert out.shape == (B, output_size), out.shape
    assert jnp.allclose(out, ref, atol=1e-2, rtol=1e-2), "mismatch vs JAX reference"

    print("KERNEL_OK")
</pallas_src>

<mosaic_0001>
module attributes {stable_mosaic.version = 11 : i64} {
  func.func @_tcn_fused_kernel(%arg0: memref<2x16x16xf32, #tpu.memory_space<vmem>>, %arg1: memref<336x16xbf16, #tpu.memory_space<vmem>>, %arg2: memref<9x16xf32, #tpu.memory_space<vmem>>, %arg3: memref<2x3xf32, #tpu.memory_space<vmem>>) attributes {dimension_semantics = [], scalar_prefetch = 0 : i64, scratch_operands = 0 : i64, tpu.core_type = #tpu.core_type<tc>} {
    %c0 = arith.constant 0 : index
    %c0_0 = arith.constant 0 : index
    %c0_1 = arith.constant 0 : index
    %0 = vector.load %arg0[%c0, %c0_0, %c0_1] : memref<2x16x16xf32, #tpu.memory_space<vmem>>, vector<2x16x16xf32>
    %1 = vector.shape_cast %0 : vector<2x16x16xf32> to vector<32x16xf32>
    %2 = tpu.iota {dimensions = array<i32: 0>} : vector<32x16xi32>
    %c16_i32 = arith.constant 16 : i32
    %c0_i32 = arith.constant 0 : i32
    %3 = arith.cmpi eq, %c16_i32, %c0_i32 : i32
    %c1_i32 = arith.constant 1 : i32
    %4 = arith.select %3, %c1_i32, %c16_i32 : i32
    %5 = vector.broadcast %4 : i32 to vector<32x16xi32>
    %6 = arith.remsi %2, %5 : vector<32x16xi32>
    %c0_i32_2 = arith.constant 0 : i32
    %7 = vector.broadcast %c0_i32_2 : i32 to vector<32x16xi32>
    %8 = arith.cmpi ne, %6, %7 : vector<32x16xi32>
    %c0_i32_3 = arith.constant 0 : i32
    %9 = vector.broadcast %c0_i32_3 : i32 to vector<32x16xi32>
    %10 = arith.cmpi slt, %6, %9 : vector<32x16xi32>
    %c0_i32_4 = arith.constant 0 : i32
    %11 = arith.cmpi slt, %4, %c0_i32_4 : i32
    %12 = vector.broadcast %11 : i1 to vector<32x16xi1>
    %13 = vector.broadcast %12 : vector<32x16xi1> to vector<32x16xi1>
    %14 = arith.xori %10, %13 : vector<32x16xi1>
    %15 = arith.andi %14, %8 : vector<32x16xi1>
    %16 = vector.broadcast %4 : i32 to vector<32x16xi32>
    %17 = arith.addi %6, %16 : vector<32x16xi32>
    %18 = arith.select %15, %17, %6 : vector<32x16xi1>, vector<32x16xi32>
    %19 = arith.truncf %1 : vector<32x16xf32> to vector<32x16xbf16>
    %cst = arith.constant 0.000000e+00 : f32
    %20 = vector.broadcast %cst : f32 to vector<32x16xf32>
    %c0_5 = arith.constant 0 : index
    %c0_6 = arith.constant 0 : index
    %21 = vector.load %arg1[%c0_5, %c0_6] : memref<336x16xbf16, #tpu.memory_space<vmem>>, vector<16x16xbf16>
    %cst_7 = arith.constant 0.000000e+00 : bf16
    %22 = vector.broadcast %cst_7 : bf16 to vector<2x16xbf16>
    %23 = vector.extract_strided_slice %19 {offsets = [0, 0], sizes = [30, 16], strides = [1, 1]} : vector<32x16xbf16> to vector<30x16xbf16>
    %24 = tpu.concatenate %22, %23 in 0 : vector<2x16xbf16>, vector<30x16xbf16> -> vector<32x16xbf16>
    %c2_i32 = arith.constant 2 : i32
    %25 = vector.broadcast %c2_i32 : i32 to vector<32x16xi32>
    %26 = arith.cmpi sge, %18, %25 : vector<32x16xi32>
    %cst_8 = arith.constant 0.000000e+00 : bf16
    %27 = vector.broadcast %cst_8 : bf16 to vector<32x16xbf16>
    %28 = arith.select %26, %24, %27 : vector<32x16xi1>, vector<32x16xbf16>
    %cst_9 = arith.constant dense<0.000000e+00> : vector<32x16xf32>
    %29 = tpu.matmul %28, %21, %cst_9 {dimension_numbers = #tpu.dot_dimension_numbers<[1], [0], [0], [1], [0, 0, 1, 1], [], []>} : vector<32x16xbf16>, vector<16x16xbf16>, vector<32x16xf32> -> vector<32x16xf32>
    %30 = arith.addf %20, %29 : vector<32x16xf32>
    %c16 = arith.constant 16 : index
    %c0_10 = arith.constant 0 : index
    %31 = vector.load %arg1[%c16, %c0_10] : memref<336x16xbf16, #tpu.memory_space<vmem>>, vector<16x16xbf16>
    %cst_11 = arith.constant 0.000000e+00 : bf16
    %32 = vector.broadcast %cst_11 : bf16 to vector<1x16xbf16>
    %33 = vector.extract_strided_slice %19 {offsets = [0, 0], sizes = [31, 16], strides = [1, 1]} : vector<32x16xbf16> to vector<31x16xbf16>
    %34 = tpu.concatenate %32, %33 in 0 : vector<1x16xbf16>, vector<31x16xbf16> -> vector<32x16xbf16>
    %c1_i32_12 = arith.constant 1 : i32
    %35 = vector.broadcast %c1_i32_12 : i32 to vector<32x16xi32>
    %36 = arith.cmpi sge, %18, %35 : vector<32x16xi32>
    %cst_13 = arith.constant 0.000000e+00 : bf16
    %37 = vector.broadcast %cst_13 : bf16 to vector<32x16xbf16>
    %38 = arith.select %36, %34, %37 : vector<32x16xi1>, vector<32x16xbf16>
    %cst_14 = arith.constant dense<0.000000e+00> : vector<32x16xf32>
    %39 = tpu.matmul %38, %31, %cst_14 {dimension_numbers = #tpu.dot_dimension_numbers<[1], [0], [0], [1], [0, 0, 1, 1], [], []>} : vector<32x16xbf16>, vector<16x16xbf16>, vector<32x16xf32> -> vector<32x16xf32>
    %40 = arith.addf %30, %39 : vector<32x16xf32>
    %c32 = arith.constant 32 : index
    %c0_15 = arith.constant 0 : index
    %41 = vector.load %arg1[%c32, %c0_15] : memref<336x16xbf16, #tpu.memory_space<vmem>>, vector<16x16xbf16>
    %cst_16 = arith.constant dense<0.000000e+00> : vector<32x16xf32>
    %42 = tpu.matmul %19, %41, %cst_16 {dimension_numbers = #tpu.dot_dimension_numbers<[1], [0], [0], [1], [0, 0, 1, 1], [], []>} : vector<32x16xbf16>, vector<16x16xbf16>, vector<32x16xf32> -> vector<32x16xf32>
    %43 = arith.addf %40, %42 : vector<32x16xf32>
    %c0_17 = arith.constant 0 : index
    %c0_18 = arith.constant 0 : index
    %44 = vector.load %arg2[%c0_17, %c0_18] : memref<9x16xf32, #tpu.memory_space<vmem>>, vector<1x16xf32>
    %45 = vector.broadcast %44 : vector<1x16xf32> to vector<32x16xf32>
    %46 = arith.addf %43, %45 : vector<32x16xf32>
    %cst_19 = arith.constant 0.000000e+00 : f32
    %47 = vector.broadcast %cst_19 : f32 to vector<32x16xf32>
    %48 = arith.maximumf %46, %47 : vector<32x16xf32>
    %49 = arith.truncf %1 : vector<32x16xf32> to vector<32x16xbf16>
    %cst_20 = arith.constant 0.000000e+00 : f32
    %50 = vector.broadcast %cst_20 : f32 to vector<32x16xf32>
    %c48 = arith.constant 48 : index
    %c0_21 = arith.constant 0 : index
    %51 = vector.load %arg1[%c48, %c0_21] : memref<336x16xbf16, #tpu.memory_space<vmem>>, vector<16x16xbf16>
    %cst_22 = arith.constant dense<0.000000e+00> : vector<32x16xf32>
    %52 = tpu.matmul %49, %51, %cst_22 {dimension_numbers = #tpu.dot_dimension_numbers<[1], [0], [0], [1], [0, 0, 1, 1], [], []>} : vector<32x16xbf16>, vector<16x16xbf16>, vector<32x16xf32> -> vector<32x16xf32>
    %53 = arith.addf %50, %52 : vector<32x16xf32>
    %c1 = arith.constant 1 : index
    %c0_23 = arith.constant 0 : index
    %54 = vector.load %arg2[%c1, %c0_23] : memref<9x16xf32, #tpu.memory_space<vmem>>, vector<1x16xf32>
    %55 = vector.broadcast %54 : vector<1x16xf32> to vector<32x16xf32>
    %56 = arith.addf %53, %55 : vector<32x16xf32>
    %57 = arith.truncf %48 : vector<32x16xf32> to vector<32x16xbf16>
    %cst_24 = arith.constant 0.000000e+00 : f32
    %58 = vector.broadcast %cst_24 : f32 to vector<32x16xf32>
    %c64 = arith.constant 64 : index
    %c0_25 = arith.constant 0 : index
    %59 = vector.load %arg1[%c64, %c0_25] : memref<336x16xbf16, #tpu.memory_space<vmem>>, vector<16x16xbf16>
    %cst_26 = arith.constant 0.000000e+00 : bf16
    %60 = vector.broadcast %cst_26 : bf16 to vector<2x16xbf16>
    %61 = vector.extract_strided_slice %57 {offsets = [0, 0], sizes = [30, 16], strides = [1, 1]} : vector<32x16xbf16> to vector<30x16xbf16>
    %62 = tpu.concatenate %60, %61 in 0 : vector<2x16xbf16>, vector<30x16xbf16> -> vector<32x16xbf16>
    %c2_i32_27 = arith.constant 2 : i32
    %63 = vector.broadcast %c2_i32_27 : i32 to vector<32x16xi32>
    %64 = arith.cmpi sge, %18, %63 : vector<32x16xi32>
    %cst_28 = arith.constant 0.000000e+00 : bf16
    %65 = vector.broadcast %cst_28 : bf16 to vector<32x16xbf16>
    %66 = arith.select %64, %62, %65 : vector<32x16xi1>, vector<32x16xbf16>
    %cst_29 = arith.constant dense<0.000000e+00> : vector<32x16xf32>
    %67 = tpu.matmul %66, %59, %cst_29 {dimension_numbers = #tpu.dot_dimension_numbers<[1], [0], [0], [1], [0, 0, 1, 1], [], []>} : vector<32x16xbf16>, vector<16x16xbf16>, vector<32x16xf32> -> vector<32x16xf32>
    %68 = arith.addf %58, %67 : vector<32x16xf32>
    %c80 = arith.constant 80 : index
    %c0_30 = arith.constant 0 : index
    %69 = vector.load %arg1[%c80, %c0_30] : memref<336x16xbf16, #tpu.memory_space<vmem>>, vector<16x16xbf16>
    %cst_31 = arith.constant 0.000000e+00 : bf16
    %70 = vector.broadcast %cst_31 : bf16 to vector<1x16xbf16>
    %71 = vector.extract_strided_slice %57 {offsets = [0, 0], sizes = [31, 16], strides = [1, 1]} : vector<32x16xbf16> to vector<31x16xbf16>
    %72 = tpu.concatenate %70, %71 in 0 : vector<1x16xbf16>, vector<31x16xbf16> -> vector<32x16xbf16>
    %c1_i32_32 = arith.constant 1 : i32
    %73 = vector.broadcast %c1_i32_32 : i32 to vector<32x16xi32>
    %74 = arith.cmpi sge, %18, %73 : vector<32x16xi32>
    %cst_33 = arith.constant 0.000000e+00 : bf16
    %75 = vector.broadcast %cst_33 : bf16 to vector<32x16xbf16>
    %76 = arith.select %74, %72, %75 : vector<32x16xi1>, vector<32x16xbf16>
    %cst_34 = arith.constant dense<0.000000e+00> : vector<32x16xf32>
    %77 = tpu.matmul %76, %69, %cst_34 {dimension_numbers = #tpu.dot_dimension_numbers<[1], [0], [0], [1], [0, 0, 1, 1], [], []>} : vector<32x16xbf16>, vector<16x16xbf16>, vector<32x16xf32> -> vector<32x16xf32>
    %78 = arith.addf %68, %77 : vector<32x16xf32>
    %c96 = arith.constant 96 : index
    %c0_35 = arith.constant 0 : index
    %79 = vector.load %arg1[%c96, %c0_35] : memref<336x16xbf16, #tpu.memory_space<vmem>>, vector<16x16xbf16>
    %cst_36 = arith.constant dense<0.000000e+00> : vector<32x16xf32>
    %80 = tpu.matmul %57, %79, %cst_36 {dimension_numbers = #tpu.dot_dimension_numbers<[1], [0], [0], [1], [0, 0, 1, 1], [], []>} : vector<32x16xbf16>, vector<16x16xbf16>, vector<32x16xf32> -> vector<32x16xf32>
    %81 = arith.addf %78, %80 : vector<32x16xf32>
    %c2 = arith.constant 2 : index
    %c0_37 = arith.constant 0 : index
    %82 = vector.load %arg2[%c2, %c0_37] : memref<9x16xf32, #tpu.memory_space<vmem>>, vector<1x16xf32>
    %83 = vector.broadcast %82 : vector<1x16xf32> to vector<32x16xf32>
    %84 = arith.addf %81, %83 : vector<32x16xf32>
    %cst_38 = arith.constant 0.000000e+00 : f32
    %85 = vector.broadcast %cst_38 : f32 to vector<32x16xf32>
    %86 = arith.maximumf %84, %85 : vector<32x16xf32>
    %87 = arith.addf %86, %56 : vector<32x16xf32>
    %cst_39 = arith.constant 0.000000e+00 : f32
    %88 = vector.broadcast %cst_39 : f32 to vector<32x16xf32>
    %89 = arith.maximumf %87, %88 : vector<32x16xf32>
    %90 = arith.truncf %89 : vector<32x16xf32> to vector<32x16xbf16>
    %cst_40 = arith.constant 0.000000e+00 : f32
    %91 = vector.broadcast %cst_40 : f32 to vector<32x16xf32>
    %c112 = arith.constant 112 : index
    %c0_41 = arith.constant 0 : index
    %92 = vector.load %arg1[%c112, %c0_41] : memref<336x16xbf16, #tpu.memory_space<vmem>>, vector<16x16xbf16>
    %cst_42 = arith.constant 0.000000e+00 : bf16
    %93 = vector.broadcast %cst_42 : bf16 to vector<4x16xbf16>
    %94 = vector.extract_strided_slice %90 {offsets = [0, 0], sizes = [28, 16], strides = [1, 1]} : vector<32x16xbf16> to vector<28x16xbf16>
    %95 = tpu.concatenate %93, %94 in 0 : vector<4x16xbf16>, vector<28x16xbf16> -> vector<32x16xbf16>
    %c4_i32 = arith.constant 4 : i32
    %96 = vector.broadcast %c4_i32 : i32 to vector<32x16xi32>
    %97 = arith.cmpi sge, %18, %96 : vector<32x16xi32>
    %cst_43 = arith.constant 0.000000e+00 : bf16
    %98 = vector.broadcast %cst_43 : bf16 to vector<32x16xbf16>
    %99 = arith.select %97, %95, %98 : vector<32x16xi1>, vector<32x16xbf16>
    %cst_44 = arith.constant dense<0.000000e+00> : vector<32x16xf32>
    %100 = tpu.matmul %99, %92, %cst_44 {dimension_numbers = #tpu.dot_dimension_numbers<[1], [0], [0], [1], [0, 0, 1, 1], [], []>} : vector<32x16xbf16>, vector<16x16xbf16>, vector<32x16xf32> -> vector<32x16xf32>
    %101 = arith.addf %91, %100 : vector<32x16xf32>
    %c128 = arith.constant 128 : index
    %c0_45 = arith.constant 0 : index
    %102 = vector.load %arg1[%c128, %c0_45] : memref<336x16xbf16, #tpu.memory_space<vmem>>, vector<16x16xbf16>
    %cst_46 = arith.constant 0.000000e+00 : bf16
    %103 = vector.broadcast %cst_46 : bf16 to vector<2x16xbf16>
    %104 = vector.extract_strided_slice %90 {offsets = [0, 0], sizes = [30, 16], strides = [1, 1]} : vector<32x16xbf16> to vector<30x16xbf16>
    %105 = tpu.concatenate %103, %104 in 0 : vector<2x16xbf16>, vector<30x16xbf16> -> vector<32x16xbf16>
    %c2_i32_47 = arith.constant 2 : i32
    %106 = vector.broadcast %c2_i32_47 : i32 to vector<32x16xi32>
    %107 = arith.cmpi sge, %18, %106 : vector<32x16xi32>
    %cst_48 = arith.constant 0.000000e+00 : bf16
    %108 = vector.broadcast %cst_48 : bf16 to vector<32x16xbf16>
    %109 = arith.select %107, %105, %108 : vector<32x16xi1>, vector<32x16xbf16>
    %cst_49 = arith.constant dense<0.000000e+00> : vector<32x16xf32>
    %110 = tpu.matmul %109, %102, %cst_49 {dimension_numbers = #tpu.dot_dimension_numbers<[1], [0], [0], [1], [0, 0, 1, 1], [], []>} : vector<32x16xbf16>, vector<16x16xbf16>, vector<32x16xf32> -> vector<32x16xf32>
    %111 = arith.addf %101, %110 : vector<32x16xf32>
    %c144 = arith.constant 144 : index
    %c0_50 = arith.constant 0 : index
    %112 = vector.load %arg1[%c144, %c0_50] : memref<336x16xbf16, #tpu.memory_space<vmem>>, vector<16x16xbf16>
    %cst_51 = arith.constant dense<0.000000e+00> : vector<32x16xf32>
    %113 = tpu.matmul %90, %112, %cst_51 {dimension_numbers = #tpu.dot_dimension_numbers<[1], [0], [0], [1], [0, 0, 1, 1], [], []>} : vector<32x16xbf16>, vector<16x16xbf16>, vector<32x16xf32> -> vector<32x16xf32>
    %114 = arith.addf %111, %113 : vector<32x16xf32>
    %c3 = arith.constant 3 : index
    %c0_52 = arith.constant 0 : index
    %115 = vector.load %arg2[%c3, %c0_52] : memref<9x16xf32, #tpu.memory_space<vmem>>, vector<1x16xf32>
    %116 = vector.broadcast %115 : vector<1x16xf32> to vector<32x16xf32>
    %117 = arith.addf %114, %116 : vector<32x16xf32>
    %cst_53 = arith.constant 0.000000e+00 : f32
    %118 = vector.broadcast %cst_53 : f32 to vector<32x16xf32>
    %119 = arith.maximumf %117, %118 : vector<32x16xf32>
    %120 = arith.truncf %119 : vector<32x16xf32> to vector<32x16xbf16>
    %cst_54 = arith.constant 0.000000e+00 : f32
    %121 = vector.broadcast %cst_54 : f32 to vector<32x16xf32>
    %c160 = arith.constant 160 : index
    %c0_55 = arith.constant 0 : index
    %122 = vector.load %arg1[%c160, %c0_55] : memref<336x16xbf16, #tpu.memory_space<vmem>>, vector<16x16xbf16>
    %cst_56 = arith.constant 0.000000e+00 : bf16
    %123 = vector.broadcast %cst_56 : bf16 to vector<4x16xbf16>
    %124 = vector.extract_strided_slice %120 {offsets = [0, 0], sizes = [28, 16], strides = [1, 1]} : vector<32x16xbf16> to vector<28x16xbf16>
    %125 = tpu.concatenate %123, %124 in 0 : vector<4x16xbf16>, vector<28x16xbf16> -> vector<32x16xbf16>
    %c4_i32_57 = arith.constant 4 : i32
    %126 = vector.broadcast %c4_i32_57 : i32 to vector<32x16xi32>
    %127 = arith.cmpi sge, %18, %126 : vector<32x16xi32>
    %cst_58 = arith.constant 0.000000e+00 : bf16
    %128 = vector.broadcast %cst_58 : bf16 to vector<32x16xbf16>
    %129 = arith.select %127, %125, %128 : vector<32x16xi1>, vector<32x16xbf16>
    %cst_59 = arith.constant dense<0.000000e+00> : vector<32x16xf32>
    %130 = tpu.matmul %129, %122, %cst_59 {dimension_numbers = #tpu.dot_dimension_numbers<[1], [0], [0], [1], [0, 0, 1, 1], [], []>} : vector<32x16xbf16>, vector<16x16xbf16>, vector<32x16xf32> -> vector<32x16xf32>
    %131 = arith.addf %121, %130 : vector<32x16xf32>
    %c176 = arith.constant 176 : index
    %c0_60 = arith.constant 0 : index
    %132 = vector.load %arg1[%c176, %c0_60] : memref<336x16xbf16, #tpu.memory_space<vmem>>, vector<16x16xbf16>
    %cst_61 = arith.constant 0.000000e+00 : bf16
    %133 = vector.broadcast %cst_61 : bf16 to vector<2x16xbf16>
    %134 = vector.extract_strided_slice %120 {offsets = [0, 0], sizes = [30, 16], strides = [1, 1]} : vector<32x16xbf16> to vector<30x16xbf16>
    %135 = tpu.concatenate %133, %134 in 0 : vector<2x16xbf16>, vector<30x16xbf16> -> vector<32x16xbf16>
    %c2_i32_62 = arith.constant 2 : i32
    %136 = vector.broadcast %c2_i32_62 : i32 to vector<32x16xi32>
    %137 = arith.cmpi sge, %18, %136 : vector<32x16xi32>
    %cst_63 = arith.constant 0.000000e+00 : bf16
    %138 = vector.broadcast %cst_63 : bf16 to vector<32x16xbf16>
    %139 = arith.select %137, %135, %138 : vector<32x16xi1>, vector<32x16xbf16>
    %cst_64 = arith.constant dense<0.000000e+00> : vector<32x16xf32>
    %140 = tpu.matmul %139, %132, %cst_64 {dimension_numbers = #tpu.dot_dimension_numbers<[1], [0], [0], [1], [0, 0, 1, 1], [], []>} : vector<32x16xbf16>, vector<16x16xbf16>, vector<32x16xf32> -> vector<32x16xf32>
    %141 = arith.addf %131, %140 : vector<32x16xf32>
    %c192 = arith.constant 192 : index
    %c0_65 = arith.constant 0 : index
    %142 = vector.load %arg1[%c192, %c0_65] : memref<336x16xbf16, #tpu.memory_space<vmem>>, vector<16x16xbf16>
    %cst_66 = arith.constant dense<0.000000e+00> : vector<32x16xf32>
    %143 = tpu.matmul %120, %142, %cst_66 {dimension_numbers = #tpu.dot_dimension_numbers<[1], [0], [0], [1], [0, 0, 1, 1], [], []>} : vector<32x16xbf16>, vector<16x16xbf16>, vector<32x16xf32> -> vector<32x16xf32>
    %144 = arith.addf %141, %143 : vector<32x16xf32>
    %c4 = arith.constant 4 : index
    %c0_67 = arith.constant 0 : index
    %145 = vector.load %arg2[%c4, %c0_67] : memref<9x16xf32, #tpu.memory_space<vmem>>, vector<1x16xf32>
    %146 = vector.broadcast %145 : vector<1x16xf32> to vector<32x16xf32>
    %147 = arith.addf %144, %146 : vector<32x16xf32>
    %cst_68 = arith.constant 0.000000e+00 : f32
    %148 = vector.broadcast %cst_68 : f32 to vector<32x16xf32>
    %149 = arith.maximumf %147, %148 : vector<32x16xf32>
    %150 = arith.addf %149, %89 : vector<32x16xf32>
    %cst_69 = arith.constant 0.000000e+00 : f32
    %151 = vector.broadcast %cst_69 : f32 to vector<32x16xf32>
    %152 = arith.maximumf %150, %151 : vector<32x16xf32>
    %153 = arith.truncf %152 : vector<32x16xf32> to vector<32x16xbf16>
    %cst_70 = arith.constant 0.000000e+00 : f32
    %154 = vector.broadcast %cst_70 : f32 to vector<32x16xf32>
    %c208 = arith.constant 208 : index
    %c0_71 = arith.constant 0 : index
    %155 = vector.load %arg1[%c208, %c0_71] : memref<336x16xbf16, #tpu.memory_space<vmem>>, vector<16x16xbf16>
    %cst_72 = arith.constant 0.000000e+00 : bf16
    %156 = vector.broadcast %cst_72 : bf16 to vector<8x16xbf16>
    %157 = vector.extract_strided_slice %153 {offsets = [0, 0], sizes = [24, 16], strides = [1, 1]} : vector<32x16xbf16> to vector<24x16xbf16>
    %158 = tpu.concatenate %156, %157 in 0 : vector<8x16xbf16>, vector<24x16xbf16> -> vector<32x16xbf16>
    %c8_i32 = arith.constant 8 : i32
    %159 = vector.broadcast %c8_i32 : i32 to vector<32x16xi32>
    %160 = arith.cmpi sge, %18, %159 : vector<32x16xi32>
    %cst_73 = arith.constant 0.000000e+00 : bf16
    %161 = vector.broadcast %cst_73 : bf16 to vector<32x16xbf16>
    %162 = arith.select %160, %158, %161 : vector<32x16xi1>, vector<32x16xbf16>
    %cst_74 = arith.constant dense<0.000000e+00> : vector<32x16xf32>
    %163 = tpu.matmul %162, %155, %cst_74 {dimension_numbers = #tpu.dot_dimension_numbers<[1], [0], [0], [1], [0, 0, 1, 1], [], []>} : vector<32x16xbf16>, vector<16x16xbf16>, vector<32x16xf32> -> vector<32x16xf32>
    %164 = arith.addf %154, %163 : vector<32x16xf32>
    %c224 = arith.constant 224 : index
    %c0_75 = arith.constant 0 : index
    %165 = vector.load %arg1[%c224, %c0_75] : memref<336x16xbf16, #tpu.memory_space<vmem>>, vector<16x16xbf16>
    %cst_76 = arith.constant 0.000000e+00 : bf16
    %166 = vector.broadcast %cst_76 : bf16 to vector<4x16xbf16>
    %167 = vector.extract_strided_slice %153 {offsets = [0, 0], sizes = [28, 16], strides = [1, 1]} : vector<32x16xbf16> to vector<28x16xbf16>
    %168 = tpu.concatenate %166, %167 in 0 : vector<4x16xbf16>, vector<28x16xbf16> -> vector<32x16xbf16>
    %c4_i32_77 = arith.constant 4 : i32
    %169 = vector.broadcast %c4_i32_77 : i32 to vector<32x16xi32>
    %170 = arith.cmpi sge, %18, %169 : vector<32x16xi32>
    %cst_78 = arith.constant 0.000000e+00 : bf16
    %171 = vector.broadcast %cst_78 : bf16 to vector<32x16xbf16>
    %172 = arith.select %170, %168, %171 : vector<32x16xi1>, vector<32x16xbf16>
    %cst_79 = arith.constant dense<0.000000e+00> : vector<32x16xf32>
    %173 = tpu.matmul %172, %165, %cst_79 {dimension_numbers = #tpu.dot_dimension_numbers<[1], [0], [0], [1], [0, 0, 1, 1], [], []>} : vector<32x16xbf16>, vector<16x16xbf16>, vector<32x16xf32> -> vector<32x16xf32>
    %174 = arith.addf %164, %173 : vector<32x16xf32>
    %c240 = arith.constant 240 : index
    %c0_80 = arith.constant 0 : index
    %175 = vector.load %arg1[%c240, %c0_80] : memref<336x16xbf16, #tpu.memory_space<vmem>>, vector<16x16xbf16>
    %cst_81 = arith.constant dense<0.000000e+00> : vector<32x16xf32>
    %176 = tpu.matmul %153, %175, %cst_81 {dimension_numbers = #tpu.dot_dimension_numbers<[1], [0], [0], [1], [0, 0, 1, 1], [], []>} : vector<32x16xbf16>, vector<16x16xbf16>, vector<32x16xf32> -> vector<32x16xf32>
    %177 = arith.addf %174, %176 : vector<32x16xf32>
    %c5 = arith.constant 5 : index
    %c0_82 = arith.constant 0 : index
    %178 = vector.load %arg2[%c5, %c0_82] : memref<9x16xf32, #tpu.memory_space<vmem>>, vector<1x16xf32>
    %179 = vector.broadcast %178 : vector<1x16xf32> to vector<32x16xf32>
    %180 = arith.addf %177, %179 : vector<32x16xf32>
    %cst_83 = arith.constant 0.000000e+00 : f32
    %181 = vector.broadcast %cst_83 : f32 to vector<32x16xf32>
    %182 = arith.maximumf %180, %181 : vector<32x16xf32>
    %183 = arith.truncf %152 : vector<32x16xf32> to vector<32x16xbf16>
    %cst_84 = arith.constant 0.000000e+00 : f32
    %184 = vector.broadcast %cst_84 : f32 to vector<32x16xf32>
    %c256 = arith.constant 256 : index
    %c0_85 = arith.constant 0 : index
    %185 = vector.load %arg1[%c256, %c0_85] : memref<336x16xbf16, #tpu.memory_space<vmem>>, vector<16x16xbf16>
    %cst_86 = arith.constant dense<0.000000e+00> : vector<32x16xf32>
    %186 = tpu.matmul %183, %185, %cst_86 {dimension_numbers = #tpu.dot_dimension_numbers<[1], [0], [0], [1], [0, 0, 1, 1], [], []>} : vector<32x16xbf16>, vector<16x16xbf16>, vector<32x16xf32> -> vector<32x16xf32>
    %187 = arith.addf %184, %186 : vector<32x16xf32>
    %c6 = arith.constant 6 : index
    %c0_87 = arith.constant 0 : index
    %188 = vector.load %arg2[%c6, %c0_87] : memref<9x16xf32, #tpu.memory_space<vmem>>, vector<1x16xf32>
    %189 = vector.broadcast %188 : vector<1x16xf32> to vector<32x16xf32>
    %190 = arith.addf %187, %189 : vector<32x16xf32>
    %191 = arith.truncf %182 : vector<32x16xf32> to vector<32x16xbf16>
    %cst_88 = arith.constant 0.000000e+00 : f32
    %192 = vector.broadcast %cst_88 : f32 to vector<32x16xf32>
    %c272 = arith.constant 272 : index
    %c0_89 = arith.constant 0 : index
    %193 = vector.load %arg1[%c272, %c0_89] : memref<336x16xbf16, #tpu.memory_space<vmem>>, vector<16x16xbf16>
    %cst_90 = arith.constant 0.000000e+00 : bf16
    %194 = vector.broadcast %cst_90 : bf16 to vector<8x16xbf16>
    %195 = vector.extract_strided_slice %191 {offsets = [0, 0], sizes = [24, 16], strides = [1, 1]} : vector<32x16xbf16> to vector<24x16xbf16>
    %196 = tpu.concatenate %194, %195 in 0 : vector<8x16xbf16>, vector<24x16xbf16> -> vector<32x16xbf16>
    %c8_i32_91 = arith.constant 8 : i32
    %197 = vector.broadcast %c8_i32_91 : i32 to vector<32x16xi32>
    %198 = arith.cmpi sge, %18, %197 : vector<32x16xi32>
    %cst_92 = arith.constant 0.000000e+00 : bf16
    %199 = vector.broadcast %cst_92 : bf16 to vector<32x16xbf16>
    %200 = arith.select %198, %196, %199 : vector<32x16xi1>, vector<32x16xbf16>
    %cst_93 = arith.constant dense<0.000000e+00> : vector<32x16xf32>
    %201 = tpu.matmul %200, %193, %cst_93 {dimension_numbers = #tpu.dot_dimension_numbers<[1], [0], [0], [1], [0, 0, 1, 1], [], []>} : vector<32x16xbf16>, vector<16x16xbf16>, vector<32x16xf32> -> vector<32x16xf32>
    %202 = arith.addf %192, %201 : vector<32x16xf32>
    %c288 = arith.constant 288 : index
    %c0_94 = arith.constant 0 : index
    %203 = vector.load %arg1[%c288, %c0_94] : memref<336x16xbf16, #tpu.memory_space<vmem>>, vector<16x16xbf16>
    %cst_95 = arith.constant 0.000000e+00 : bf16
    %204 = vector.broadcast %cst_95 : bf16 to vector<4x16xbf16>
    %205 = vector.extract_strided_slice %191 {offsets = [0, 0], sizes = [28, 16], strides = [1, 1]} : vector<32x16xbf16> to vector<28x16xbf16>
    %206 = tpu.concatenate %204, %205 in 0 : vector<4x16xbf16>, vector<28x16xbf16> -> vector<32x16xbf16>
    %c4_i32_96 = arith.constant 4 : i32
    %207 = vector.broadcast %c4_i32_96 : i32 to vector<32x16xi32>
    %208 = arith.cmpi sge, %18, %207 : vector<32x16xi32>
    %cst_97 = arith.constant 0.000000e+00 : bf16
    %209 = vector.broadcast %cst_97 : bf16 to vector<32x16xbf16>
    %210 = arith.select %208, %206, %209 : vector<32x16xi1>, vector<32x16xbf16>
    %cst_98 = arith.constant dense<0.000000e+00> : vector<32x16xf32>
    %211 = tpu.matmul %210, %203, %cst_98 {dimension_numbers = #tpu.dot_dimension_numbers<[1], [0], [0], [1], [0, 0, 1, 1], [], []>} : vector<32x16xbf16>, vector<16x16xbf16>, vector<32x16xf32> -> vector<32x16xf32>
    %212 = arith.addf %202, %211 : vector<32x16xf32>
    %c304 = arith.constant 304 : index
    %c0_99 = arith.constant 0 : index
    %213 = vector.load %arg1[%c304, %c0_99] : memref<336x16xbf16, #tpu.memory_space<vmem>>, vector<16x16xbf16>
    %cst_100 = arith.constant dense<0.000000e+00> : vector<32x16xf32>
    %214 = tpu.matmul %191, %213, %cst_100 {dimension_numbers = #tpu.dot_dimension_numbers<[1], [0], [0], [1], [0, 0, 1, 1], [], []>} : vector<32x16xbf16>, vector<16x16xbf16>, vector<32x16xf32> -> vector<32x16xf32>
    %215 = arith.addf %212, %214 : vector<32x16xf32>
    %c7 = arith.constant 7 : index
    %c0_101 = arith.constant 0 : index
    %216 = vector.load %arg2[%c7, %c0_101] : memref<9x16xf32, #tpu.memory_space<vmem>>, vector<1x16xf32>
    %217 = vector.broadcast %216 : vector<1x16xf32> to vector<32x16xf32>
    %218 = arith.addf %215, %217 : vector<32x16xf32>
    %cst_102 = arith.constant 0.000000e+00 : f32
    %219 = vector.broadcast %cst_102 : f32 to vector<32x16xf32>
    %220 = arith.maximumf %218, %219 : vector<32x16xf32>
    %221 = arith.addf %220, %190 : vector<32x16xf32>
    %cst_103 = arith.constant 0.000000e+00 : f32
    %222 = vector.broadcast %cst_103 : f32 to vector<32x16xf32>
    %223 = arith.maximumf %221, %222 : vector<32x16xf32>
    %224 = vector.extract_strided_slice %223 {offsets = [15, 0], sizes = [1, 16], strides = [1, 1]} : vector<32x16xf32> to vector<1x16xf32>
    %225 = vector.extract_strided_slice %223 {offsets = [31, 0], sizes = [1, 16], strides = [1, 1]} : vector<32x16xf32> to vector<1x16xf32>
    %226 = tpu.concatenate %224, %225 in 0 : vector<1x16xf32>, vector<1x16xf32> -> vector<2x16xf32>
    %227 = arith.truncf %226 : vector<2x16xf32> to vector<2x16xbf16>
    %c320 = arith.constant 320 : index
    %c0_104 = arith.constant 0 : index
    %228 = vector.load %arg1[%c320, %c0_104] : memref<336x16xbf16, #tpu.memory_space<vmem>>, vector<16x16xbf16>
    %cst_105 = arith.constant dense<0.000000e+00> : vector<2x16xf32>
    %229 = tpu.matmul %227, %228, %cst_105 {dimension_numbers = #tpu.dot_dimension_numbers<[1], [0], [0], [1], [0, 0, 1, 1], [], []>} : vector<2x16xbf16>, vector<16x16xbf16>, vector<2x16xf32> -> vector<2x16xf32>
    %c8 = arith.constant 8 : index
    %c0_106 = arith.constant 0 : index
    %230 = vector.load %arg2[%c8, %c0_106] : memref<9x16xf32, #tpu.memory_space<vmem>>, vector<1x16xf32>
    %231 = vector.broadcast %230 : vector<1x16xf32> to vector<2x16xf32>
    %232 = arith.addf %229, %231 : vector<2x16xf32>
    %233 = vector.extract_strided_slice %232 {offsets = [0, 0], sizes = [2, 3], strides = [1, 1]} : vector<2x16xf32> to vector<2x3xf32>
    %c0_107 = arith.constant 0 : index
    %c0_108 = arith.constant 0 : index
    %234 = vector.load %arg3[%c0_107, %c0_108] : memref<2x3xf32, #tpu.memory_space<vmem>>, vector<2x3xf32>
    tpu.vector_store %arg3[%c0_107, %c0_108], %233 {strides = array<i32>} : memref<2x3xf32, #tpu.memory_space<vmem>>, vector<2x3xf32>,
    return
  }
}

</mosaic_0001>

<llo_original>
// kernel: tcn_forward.1
$region0: #{tcn_forward.1}
  #allocation0 [shape = 'u32[]', space=smem, size = 0x4, offset = 0x4, fixed_abs, tag = 'smem constant byte address 0x4 - core index']
  #allocation1 [shape = 'u32[144,128]{1,0:T(1,128)}', space=vmem, size = 0x12000, scoped, tag = 'internal scratch']
  %s0 = inlined_call_operand.vmem [shape: f32[2,16,16], index: 0, kind: input, shape index: {}]
  %s1 = inlined_call_operand.vmem [shape: bf16[336,16], index: 1, kind: input, shape index: {}]
  %s2 = inlined_call_operand.vmem [shape: f32[9,16], index: 2, kind: input, shape index: {}]
  %s3 = inlined_call_operand.hbm [shape: f32[2,3], index: 3, kind: output, shape index: {}]
  %s4 = sld [smem:[#allocation0]]
  $region22: #{tcn_forward.1} parent=0
    _
  %s6 = ssub.s32 1, %s4
  %s7 = scalar_select 0, %s6, %s4
  $region1: #{tcn_forward.1} parent=0
    #allocation2 [shape = 'u8[1024]{0}', space=vmem, size = 0x400, scoped, tag = 'output window, operand 0, single buffered']
    #allocation3 [shape = 's32[1]{0}', space=sflag, size = 0x4, scoped, tag = 'scoped memory for tcn_forward.1']
    %8 = vsyncpa [#allocation3], 0
    // Predicated region
    $region2: #{tcn_forward.1} parent=1 // pred_check
      _
    $region3: #{tcn_forward.1} parent=1 // pred_check_branch
      %10 = sbr.rel (0) target = $region5
    $region4: #{tcn_forward.1} parent=1 // pred_region
      _
    $region5: #{tcn_forward.1} parent=1 // pred_fallthru
      _
    // Predicated region
    $region6: #{tcn_forward.1} parent=1 // pred_check
      _
    $region7: #{tcn_forward.1} parent=1 // pred_check_branch
      %12 = sbr.rel (0) target = $region9
    $region8: #{tcn_forward.1} parent=1 // pred_region
      _
    $region9: #{tcn_forward.1} parent=1 // pred_fallthru
      _
    // Predicated region
    $region10: #{tcn_forward.1} parent=1 // pred_check
      _
    $region11: #{tcn_forward.1} parent=1 // pred_check_branch
      %14 = sbr.rel (0) target = $region13
    $region12: #{tcn_forward.1} parent=1 // pred_region
      _
    $region13: #{tcn_forward.1} parent=1 // pred_fallthru
      _
    %v18 = vld [vmem:[%s0] sm:$0xff]
    %v19 = vld [vmem:[%s0 + $0x8] sm:$0xff]
    %v20 = vld [vmem:[%s0 + $0x10] sm:$0xff]
    %v21 = vld [vmem:[%s0 + $0x18] sm:$0xff]
    %v22 = vlaneseq
    %v23 = vshrl.u32 %v22, 7
    %v24 = vadd.s32 %v23, 8
    %v25 = vadd.s32 %v23, 16
    %v26 = vadd.s32 %v23, 24
    %vm27 = vcmp.lt.s32.totalorder %v23, 0
    %v28 = vsub.s32 0, %v23
    %v29 = vsel %vm27, %v28, %v23
    %v30 = vshrl.u32 %v29, 4
    %v31 = vand.u32 %v29, 15
    %v32 = vsub.s32 0, %v31
    %v33 = vsel %vm27, %v32, %v31
    %vm34 = vcmp.lt.s32.totalorder %v24, 0
    %v35 = vsub.s32 0, %v24
    %v36 = vsel %vm34, %v35, %v24
    %v37 = vshrl.u32 %v36, 4
    %v38 = vand.u32 %v36, 15
    %v39 = vsub.s32 0, %v38
    %v40 = vsel %vm34, %v39, %v38
    %vm41 = vcmp.lt.s32.totalorder %v25, 0
    %v42 = vsub.s32 0, %v25
    %v43 = vsel %vm41, %v42, %v25
    %v44 = vshrl.u32 %v43, 4
    %v45 = vand.u32 %v43, 15
    %v46 = vsub.s32 0, %v45
    %v47 = vsel %vm41, %v46, %v45
    %vm48 = vcmp.lt.s32.totalorder %v26, 0
    %v49 = vsub.s32 0, %v26
    %v50 = vsel %vm48, %v49, %v26
    %v51 = vshrl.u32 %v50, 4
    %v52 = vand.u32 %v50, 15
    %v53 = vsub.s32 0, %v52
    %v54 = vsel %vm48, %v53, %v52
    %vm55 = vcmp.ne.s32.totalorder %v33, 0
    %vm56 = vcmp.ne.s32.totalorder %v40, 0
    %vm57 = vcmp.ne.s32.totalorder %v47, 0
    %vm58 = vcmp.ne.s32.totalorder %v54, 0
    %vm59 = vcmp.lt.s32.totalorder %v33, 0
    %vm60 = vcmp.lt.s32.totalorder %v40, 0
    %vm61 = vcmp.lt.s32.totalorder %v47, 0
    %vm62 = vcmp.lt.s32.totalorder %v54, 0
    %vm63 = vmand %vm59, %vm55
    %vm64 = vmand %vm60, %vm56
    %vm65 = vmand %vm61, %vm57
    %vm66 = vmand %vm62, %vm58
    %v67 = vadd.s32 %v33, 16
    %v68 = vadd.s32 %v40, 16
    %v69 = vadd.s32 %v47, 16
    %v70 = vadd.s32 %v54, 16
    %v71 = vsel %vm63, %v67, %v33
    %v72 = vsel %vm64, %v68, %v40
    %v73 = vsel %vm65, %v69, %v47
    %v74 = vsel %vm66, %v70, %v54
    %v75 = vpack.c.bf16 %v19, %v18
    %v76 = vpack.c.bf16 %v21, %v20
    %v77 = vld [vmem:[%s1] sm:$0xf]
    %v78 = vld [vmem:[%s1 + $0x4] sm:$0xf]
    %vm81 = vcmask 1040384
    %v82 = vrot.slane %v75, 7
    %v83 = vrot.slane %v76, 7
    %v84 = vsel %vm81, %v82, %v83
    %vm86 = vcmask 1040384
    %v89 = vsel %vm86, 0, %v82
    %vm91 = vcmp.ge.s32.totalorder %v71, 2
    %vm92 = vcmp.ge.s32.totalorder %v72, 2
    %vm93 = vcmp.ge.s32.totalorder %v73, 2
    %vm94 = vcmp.ge.s32.totalorder %v74, 2
    %vm95 = vmpackc.low %vm91, %vm91
    %vm96 = vmpackc.low %vm92, %vm92
    %vm97 = vmpackc.low %vm93, %vm93
    %vm98 = vmpackc.low %vm94, %vm94
    %v99 = vsel %vm95, 65537, 0
    %v100 = vsel %vm96, 65537, 0
    %v101 = vsel %vm97, 65537, 0
    %v102 = vsel %vm98, 65537, 0
    %v103 = vunpack.c.l.b16 %v99
    %v104 = vunpack.c.l.b16 %v100
    %v105 = vunpack.c.l.b16 %v101
    %v106 = vunpack.c.l.b16 %v102
    %v107 = vpack.c.b16 %v104, %v103
    %v108 = vpack.c.b16 %v106, %v105
    %vm109 = vcmp.ne.s16.totalorder %v107, 0
    %vm110 = vcmp.ne.s16.totalorder %v108, 0
    %v111 = vsel %vm109, %v89, 0
    %v112 = vsel %vm110, %v84, 0
    %v113 = vld [vmem:[%s1 + $0x8] sm:$0xf]
    %v114 = vld [vmem:[%s1 + $0xc] sm:$0xf]
    %vm115 = vsmask.f32 256
    %v117 = vshrl.u32 %v75, 16
    %v119 = vrot.slane %v117, 7
    %v120 = vshll.u32 %v75, 16
    %v122 = vor.u32 %v119, %v120
    %v124 = vshrl.u32 %v76, 16
    %v126 = vrot.slane %v124, 7
    %v127 = vshll.u32 %v76, 16
    %v129 = vor.u32 %v126, %v127
    %v130 = vsel %vm115, %v119, %v129
    %vm133 = vmand %vm81, %vm115
    %v134 = vsel %vm133, 0, %v122
    %vm135 = vcmp.ge.s32.totalorder %v71, 1
    %vm136 = vcmp.ge.s32.totalorder %v72, 1
    %vm137 = vcmp.ge.s32.totalorder %v73, 1
    %vm138 = vcmp.ge.s32.totalorder %v74, 1
    %vm139 = vmpackc.low %vm135, %vm135
    %vm140 = vmpackc.low %vm136, %vm136
    %vm141 = vmpackc.low %vm137, %vm137
    %vm142 = vmpackc.low %vm138, %vm138
    %v143 = vsel %vm139, 65537, 0
    %v144 = vsel %vm140, 65537, 0
    %v145 = vsel %vm141, 65537, 0
    %v146 = vsel %vm142, 65537, 0
    %v147 = vunpack.c.l.b16 %v143
    %v148 = vunpack.c.l.b16 %v144
    %v149 = vunpack.c.l.b16 %v145
    %v150 = vunpack.c.l.b16 %v146
    %v151 = vpack.c.b16 %v148, %v147
    %v152 = vpack.c.b16 %v150, %v149
    %vm153 = vcmp.ne.s16.totalorder %v151, 0
    %vm154 = vcmp.ne.s16.totalorder %v152, 0
    %v155 = vsel %vm153, %v134, 0
    %v156 = vsel %vm154, %v130, 0
    %v159 = vunpack.c.l.b16 %v113
    %v160 = vunpack.c.l.b16 %v114
    %v161 = vpack.c.b16 %v160, %v159
    %vm163 = vcmask 130048
    %v165 = vsel %vm163, %v155, 0
    %v168 = vsel %vm163, %v156, 0
    %170 = vmatprep.subr.bf16.mxu0 0
    %171 = vmatpush1.bf16.msra.mxu0 %v161
    %172 = vmatprep.subr.bf16.mxu0 0
    %173 = vmatpush1.bf16.msra.mxu0 0
    %174 = vmatprep.subr.bf16.mxu0 0
    %175 = vmatpush1.bf16.msra.mxu0 0
    %176 = vmatprep.subr.bf16.mxu0 0
    %177 = vmatpush1.bf16.msra.mxu0 0
    %178 = vmatprep.subr.bf16.mxu0 0
    %179 = vmatpush1.bf16.msra.mxu0 0
    %180 = vmatprep.subr.bf16.mxu0 0
    %181 = vmatpush1.bf16.msra.mxu0 0
    %182 = vmatprep.subr.bf16.mxu0 0
    %183 = vmatpush1.bf16.msra.mxu0 0
    %184 = vmatprep.subr.bf16.mxu0 0
    %185 = vmatpush1.bf16.msra.mxu0 0
    %186 = vmatprep.subr.bf16.mxu0 0
    %187 = vmatpush1.bf16.msra.mxu0 0
    %188 = vmatprep.subr.bf16.mxu0 0
    %189 = vmatpush1.bf16.msra.mxu0 0
    %190 = vmatprep.subr.bf16.mxu0 0
    %191 = vmatpush1.bf16.msra.mxu0 0
    %192 = vmatprep.subr.bf16.mxu0 0
    %193 = vmatpush1.bf16.msra.mxu0 0
    %194 = vmatprep.subr.bf16.mxu0 0
    %195 = vmatpush1.bf16.msra.mxu0 0
    %196 = vmatprep.subr.bf16.mxu0 0
    %197 = vmatpush1.bf16.msra.mxu0 0
    %198 = vmatprep.subr.bf16.mxu0 0
    %199 = vmatpush1.bf16.msra.mxu0 0
    %200 = vmatprep.subr.bf16.mxu0 0
    %201 = vmatpush1.bf16.msra.mxu0 0
    %202 = vmatprep.mubr.bf16.mxu0 0
    %203 = vmatmul.mubr.bf16.gmra.mrb[0].mxu0 %v165
    %v204 = vpop.f32.mrb[0].mxu0
    %v205 = vadd.f32 0.0, %v204
    %v206 = vpop.f32.mrb[0].mxu0
    %v207 = vpop.f32.mrb[0].mxu0
    %v208 = vadd.f32 0.0, %v207
    %v209 = vpop.f32.mrb[0].mxu0
    %210 = vmatprep.mubr.bf16.mxu0 0
    %211 = vmatmul.mubr.bf16.gmra.mrb[0].mxu0 %v168
    %v212 = vpop.f32.mrb[0].mxu0
    %v213 = vadd.f32 0.0, %v212
    %v214 = vpop.f32.mrb[0].mxu0
    %v215 = vpop.f32.mrb[0].mxu0
    %v216 = vadd.f32 0.0, %v215
    %v217 = vpop.f32.mrb[0].mxu0
    %218 = vdwg.mxu0
    %v221 = vunpack.c.l.b16 %v77
    %v222 = vunpack.c.l.b16 %v78
    %v223 = vpack.c.b16 %v222, %v221
    %v226 = vsel %vm163, %v111, 0
    %v229 = vsel %vm163, %v112, 0
    %231 = vmatprep.subr.bf16.mxu0 0
    %232 = vmatpush1.bf16.msra.mxu0 %v223
    %233 = vmatprep.subr.bf16.mxu0 0
    %234 = vmatpush1.bf16.msra.mxu0 0
    %235 = vmatprep.subr.bf16.mxu0 0
    %236 = vmatpush1.bf16.msra.mxu0 0
    %237 = vmatprep.subr.bf16.mxu0 0
    %238 = vmatpush1.bf16.msra.mxu0 0
    %239 = vmatprep.subr.bf16.mxu0 0
    %240 = vmatpush1.bf16.msra.mxu0 0
    %241 = vmatprep.subr.bf16.mxu0 0
    %242 = vmatpush1.bf16.msra.mxu0 0
    %243 = vmatprep.subr.bf16.mxu0 0
    %244 = vmatpush1.bf16.msra.mxu0 0
    %245 = vmatprep.subr.bf16.mxu0 0
    %246 = vmatpush1.bf16.msra.mxu0 0
    %247 = vmatprep.subr.bf16.mxu0 0
    %248 = vmatpush1.bf16.msra.mxu0 0
    %249 = vmatprep.subr.bf16.mxu0 0
    %250 = vmatpush1.bf16.msra.mxu0 0
    %251 = vmatprep.subr.bf16.mxu0 0
    %252 = vmatpush1.bf16.msra.mxu0 0
    %253 = vmatprep.subr.bf16.mxu0 0
    %254 = vmatpush1.bf16.msra.mxu0 0
    %255 = vmatprep.subr.bf16.mxu0 0
    %256 = vmatpush1.bf16.msra.mxu0 0
    %257 = vmatprep.subr.bf16.mxu0 0
    %258 = vmatpush1.bf16.msra.mxu0 0
    %259 = vmatprep.subr.bf16.mxu0 0
    %260 = vmatpush1.bf16.msra.mxu0 0
    %261 = vmatprep.subr.bf16.mxu0 0
    %262 = vmatpush1.bf16.msra.mxu0 0
    %263 = vmatprep.mubr.bf16.mxu0 0
    %264 = vmatmul.mubr.bf16.gmra.mrb[0].mxu0 %v226
    %v265 = vpop.f32.mrb[0].mxu0
    %v266 = vadd.f32 %v205, %v265
    %v267 = vpop.f32.mrb[0].mxu0
    %v268 = vpop.f32.mrb[0].mxu0
    %v269 = vadd.f32 %v208, %v268
    %v270 = vpop.f32.mrb[0].mxu0
    %271 = vmatprep.mubr.bf16.mxu0 0
    %272 = vmatmul.mubr.bf16.gmra.mrb[0].mxu0 %v229
    %v273 = vpop.f32.mrb[0].mxu0
    %v274 = vadd.f32 %v213, %v273
    %v275 = vpop.f32.mrb[0].mxu0
    %v276 = vpop.f32.mrb[0].mxu0
    %v277 = vadd.f32 %v216, %v276
    %v278 = vpop.f32.mrb[0].mxu0
    %279 = vdwg.mxu0
    %v280 = vld [vmem:[%s1 + $0x10] sm:$0xf]
    %v281 = vld [vmem:[%s1 + $0x14] sm:$0xf]
    %v284 = vunpack.c.l.b16 %v280
    %v285 = vunpack.c.l.b16 %v281
    %v286 = vpack.c.b16 %v285, %v284
    %v288 = vsel %vm163, %v75, 0
    %v290 = vsel %vm163, %v76, 0
    %292 = vmatprep.subr.bf16.mxu0 0
    %293 = vmatpush1.bf16.msra.mxu0 %v286
    %294 = vmatprep.subr.bf16.mxu0 0
    %295 = vmatpush1.bf16.msra.mxu0 0
    %296 = vmatprep.subr.bf16.mxu0 0
    %297 = vmatpush1.bf16.msra.mxu0 0
    %298 = vmatprep.subr.bf16.mxu0 0
    %299 = vmatpush1.bf16.msra.mxu0 0
    %300 = vmatprep.subr.bf16.mxu0 0
    %301 = vmatpush1.bf16.msra.mxu0 0
    %302 = vmatprep.subr.bf16.mxu0 0
    %303 = vmatpush1.bf16.msra.mxu0 0
    %304 = vmatprep.subr.bf16.mxu0 0
    %305 = vmatpush1.bf16.msra.mxu0 0
    %306 = vmatprep.subr.bf16.mxu0 0
    %307 = vmatpush1.bf16.msra.mxu0 0
    %308 = vmatprep.subr.bf16.mxu0 0
    %309 = vmatpush1.bf16.msra.mxu0 0
    %310 = vmatprep.subr.bf16.mxu0 0
    %311 = vmatpush1.bf16.msra.mxu0 0
    %312 = vmatprep.subr.bf16.mxu0 0
    %313 = vmatpush1.bf16.msra.mxu0 0
    %314 = vmatprep.subr.bf16.mxu0 0
    %315 = vmatpush1.bf16.msra.mxu0 0
    %316 = vmatprep.subr.bf16.mxu0 0
    %317 = vmatpush1.bf16.msra.mxu0 0
    %318 = vmatprep.subr.bf16.mxu0 0
    %319 = vmatpush1.bf16.msra.mxu0 0
    %320 = vmatprep.subr.bf16.mxu0 0
    %321 = vmatpush1.bf16.msra.mxu0 0
    %322 = vmatprep.subr.bf16.mxu0 0
    %323 = vmatpush1.bf16.msra.mxu0 0
    %324 = vmatprep.mubr.bf16.mxu0 0
    %325 = vmatmul.mubr.bf16.gmra.mrb[0].mxu0 %v288
    %v326 = vpop.f32.mrb[0].mxu0
    %v327 = vadd.f32 0.0, %v326
    %v328 = vpop.f32.mrb[0].mxu0
    %v329 = vpop.f32.mrb[0].mxu0
    %v330 = vadd.f32 0.0, %v329
    %v331 = vpop.f32.mrb[0].mxu0
    %332 = vmatprep.mubr.bf16.mxu0 0
    %333 = vmatmul.mubr.bf16.gmra.mrb[0].mxu0 %v290
    %v334 = vpop.f32.mrb[0].mxu0
    %v335 = vadd.f32 0.0, %v334
    %v336 = vpop.f32.mrb[0].mxu0
    %v337 = vpop.f32.mrb[0].mxu0
    %v338 = vadd.f32 0.0, %v337
    %v339 = vpop.f32.mrb[0].mxu0
    %340 = vdwg.mxu0
    %v341 = vadd.f32 %v266, %v327
    %v342 = vadd.f32 %v269, %v330
    %v343 = vadd.f32 %v274, %v335
    %v344 = vadd.f32 %v277, %v338
    %v345 = vld [vmem:[%s2] sm:$0x1]
    %v346 = vlaneseq
    %v347 = vshrl.u32 %v346, 7
    %v348 = vsub.s32 0, %v347
    %v349 = vrot.slane %v345, %v348
    %v350 = vadd.f32 %v341, %v349
    %v351 = vadd.f32 %v342, %v349
    %v352 = vadd.f32 %v343, %v349
    %v353 = vadd.f32 %v344, %v349
    %v354 = vmax.f32 %v350, 0.0
    %v355 = vmax.f32 %v351, 0.0
    %v356 = vmax.f32 %v352, 0.0
    %v357 = vmax.f32 %v353, 0.0
    %v358 = vld [vmem:[%s1 + $0x18] sm:$0xf]
    %v359 = vld [vmem:[%s1 + $0x1c] sm:$0xf]
    %v360 = vld [vmem:[%s2 + $0x1] sm:$0x1]
    %v361 = vlaneseq
    %v362 = vshrl.u32 %v361, 7
    %v363 = vsub.s32 0, %v362
    %v364 = vrot.slane %v360, %v363
    %v367 = vunpack.c.l.b16 %v358
    %v368 = vunpack.c.l.b16 %v359
    %v369 = vpack.c.b16 %v368, %v367
    %371 = vmatprep.subr.bf16.mxu0 0
    %372 = vmatpush1.bf16.msra.mxu0 %v369
    %373 = vmatprep.subr.bf16.mxu0 0
    %374 = vmatpush1.bf16.msra.mxu0 0
    %375 = vmatprep.subr.bf16.mxu0 0
    %376 = vmatpush1.bf16.msra.mxu0 0
    %377 = vmatprep.subr.bf16.mxu0 0
    %378 = vmatpush1.bf16.msra.mxu0 0
    %379 = vmatprep.subr.bf16.mxu0 0
    %380 = vmatpush1.bf16.msra.mxu0 0
    %381 = vmatprep.subr.bf16.mxu0 0
    %382 = vmatpush1.bf16.msra.mxu0 0
    %383 = vmatprep.subr.bf16.mxu0 0
    %384 = vmatpush1.bf16.msra.mxu0 0
    %385 = vmatprep.subr.bf16.mxu0 0
    %386 = vmatpush1.bf16.msra.mxu0 0
    %387 = vmatprep.subr.bf16.mxu0 0
    %388 = vmatpush1.bf16.msra.mxu0 0
    %389 = vmatprep.subr.bf16.mxu0 0
    %390 = vmatpush1.bf16.msra.mxu0 0
    %391 = vmatprep.subr.bf16.mxu0 0
    %392 = vmatpush1.bf16.msra.mxu0 0
    %393 = vmatprep.subr.bf16.mxu0 0
    %394 = vmatpush1.bf16.msra.mxu0 0
    %395 = vmatprep.subr.bf16.mxu0 0
    %396 = vmatpush1.bf16.msra.mxu0 0
    %397 = vmatprep.subr.bf16.mxu0 0
    %398 = vmatpush1.bf16.msra.mxu0 0
    %399 = vmatprep.subr.bf16.mxu0 0
    %400 = vmatpush1.bf16.msra.mxu0 0
    %401 = vmatprep.subr.bf16.mxu0 0
    %402 = vmatpush1.bf16.msra.mxu0 0
    %403 = vmatprep.mubr.bf16.mxu0 0
    %404 = vmatmul.mubr.bf16.gmra.mrb[0].mxu0 %v288
    %v405 = vpop.f32.mrb[0].mxu0
    %v406 = vadd.f32 %v364, %v405
    %v407 = vpop.f32.mrb[0].mxu0
    %v408 = vpop.f32.mrb[0].mxu0
    %v409 = vadd.f32 %v364, %v408
    %v410 = vpop.f32.mrb[0].mxu0
    %411 = vmatprep.mubr.bf16.mxu0 0
    %412 = vmatmul.mubr.bf16.gmra.mrb[0].mxu0 %v290
    %v413 = vpop.f32.mrb[0].mxu0
    %v414 = vadd.f32 %v364, %v413
    %v415 = vpop.f32.mrb[0].mxu0
    %v416 = vpop.f32.mrb[0].mxu0
    %v417 = vadd.f32 %v364, %v416
    %v418 = vpop.f32.mrb[0].mxu0
    %419 = vdwg.mxu0
    %v420 = vpack.c.bf16 %v355, %v354
    %v421 = vpack.c.bf16 %v357, %v356
    %v422 = vld [vmem:[%s1 + $0x20] sm:$0xf]
    %v423 = vld [vmem:[%s1 + $0x24] sm:$0xf]
    %v426 = vrot.slane %v420, 7
    %v427 = vrot.slane %v421, 7
    %v428 = vsel %vm81, %v426, %v427
    %v431 = vsel %vm86, 0, %v426
    %v433 = vsel %vm109, %v431, 0
    %v434 = vsel %vm110, %v428, 0
    %v435 = vld [vmem:[%s1 + $0x28] sm:$0xf]
    %v436 = vld [vmem:[%s1 + $0x2c] sm:$0xf]
    %v438 = vshrl.u32 %v420, 16
    %v440 = vrot.slane %v438, 7
    %v441 = vshll.u32 %v420, 16
    %v443 = vor.u32 %v440, %v441
    %v445 = vshrl.u32 %v421, 16
    %v447 = vrot.slane %v445, 7
    %v448 = vshll.u32 %v421, 16
    %v450 = vor.u32 %v447, %v448
    %v451 = vsel %vm115, %v440, %v450
    %v454 = vsel %vm133, 0, %v443
    %v455 = vsel %vm153, %v454, 0
    %v456 = vsel %vm154, %v451, 0
    %v459 = vunpack.c.l.b16 %v435
    %v460 = vunpack.c.l.b16 %v436
    %v461 = vpack.c.b16 %v460, %v459
    %v464 = vsel %vm163, %v455, 0
    %v467 = vsel %vm163, %v456, 0
    %469 = vmatprep.subr.bf16.mxu0 0
    %470 = vmatpush1.bf16.msra.mxu0 %v461
    %471 = vmatprep.subr.bf16.mxu0 0
    %472 = vmatpush1.bf16.msra.mxu0 0
    %473 = vmatprep.subr.bf16.mxu0 0
    %474 = vmatpush1.bf16.msra.mxu0 0
    %475 = vmatprep.subr.bf16.mxu0 0
    %476 = vmatpush1.bf16.msra.mxu0 0
    %477 = vmatprep.subr.bf16.mxu0 0
    %478 = vmatpush1.bf16.msra.mxu0 0
    %479 = vmatprep.subr.bf16.mxu0 0
    %480 = vmatpush1.bf16.msra.mxu0 0
    %481 = vmatprep.subr.bf16.mxu0 0
    %482 = vmatpush1.bf16.msra.mxu0 0
    %483 = vmatprep.subr.bf16.mxu0 0
    %484 = vmatpush1.bf16.msra.mxu0 0
    %485 = vmatprep.subr.bf16.mxu0 0
    %486 = vmatpush1.bf16.msra.mxu0 0
    %487 = vmatprep.subr.bf16.mxu0 0
    %488 = vmatpush1.bf16.msra.mxu0 0
    %489 = vmatprep.subr.bf16.mxu0 0
    %490 = vmatpush1.bf16.msra.mxu0 0
    %491 = vmatprep.subr.bf16.mxu0 0
    %492 = vmatpush1.bf16.msra.mxu0 0
    %493 = vmatprep.subr.bf16.mxu0 0
    %494 = vmatpush1.bf16.msra.mxu0 0
    %495 = vmatprep.subr.bf16.mxu0 0
    %496 = vmatpush1.bf16.msra.mxu0 0
    %497 = vmatprep.subr.bf16.mxu0 0
    %498 = vmatpush1.bf16.msra.mxu0 0
    %499 = vmatprep.subr.bf16.mxu0 0
    %500 = vmatpush1.bf16.msra.mxu0 0
    %501 = vmatprep.mubr.bf16.mxu0 0
    %502 = vmatmul.mubr.bf16.gmra.mrb[0].mxu0 %v464
    %v503 = vpop.f32.mrb[0].mxu0
    %v504 = vadd.f32 0.0, %v503
    %v505 = vpop.f32.mrb[0].mxu0
    %v506 = vpop.f32.mrb[0].mxu0
    %v507 = vadd.f32 0.0, %v506
    %v508 = vpop.f32.mrb[0].mxu0
    %509 = vmatprep.mubr.bf16.mxu0 0
    %510 = vmatmul.mubr.bf16.gmra.mrb[0].mxu0 %v467
    %v511 = vpop.f32.mrb[0].mxu0
    %v512 = vadd.f32 0.0, %v511
    %v513 = vpop.f32.mrb[0].mxu0
    %v514 = vpop.f32.mrb[0].mxu0
    %v515 = vadd.f32 0.0, %v514
    %v516 = vpop.f32.mrb[0].mxu0
    %517 = vdwg.mxu0
    %v520 = vunpack.c.l.b16 %v422
    %v521 = vunpack.c.l.b16 %v423
    %v522 = vpack.c.b16 %v521, %v520
    %v525 = vsel %vm163, %v433, 0
    %v528 = vsel %vm163, %v434, 0
    %530 = vmatprep.subr.bf16.mxu0 0
    %531 = vmatpush1.bf16.msra.mxu0 %v522
    %532 = vmatprep.subr.bf16.mxu0 0
    %533 = vmatpush1.bf16.msra.mxu0 0
    %534 = vmatprep.subr.bf16.mxu0 0
    %535 = vmatpush1.bf16.msra.mxu0 0
    %536 = vmatprep.subr.bf16.mxu0 0
    %537 = vmatpush1.bf16.msra.mxu0 0
    %538 = vmatprep.subr.bf16.mxu0 0
    %539 = vmatpush1.bf16.msra.mxu0 0
    %540 = vmatprep.subr.bf16.mxu0 0
    %541 = vmatpush1.bf16.msra.mxu0 0
    %542 = vmatprep.subr.bf16.mxu0 0
    %543 = vmatpush1.bf16.msra.mxu0 0
    %544 = vmatprep.subr.bf16.mxu0 0
    %545 = vmatpush1.bf16.msra.mxu0 0
    %546 = vmatprep.subr.bf16.mxu0 0
    %547 = vmatpush1.bf16.msra.mxu0 0
    %548 = vmatprep.subr.bf16.mxu0 0
    %549 = vmatpush1.bf16.msra.mxu0 0
    %550 = vmatprep.subr.bf16.mxu0 0
    %551 = vmatpush1.bf16.msra.mxu0 0
    %552 = vmatprep.subr.bf16.mxu0 0
    %553 = vmatpush1.bf16.msra.mxu0 0
    %554 = vmatprep.subr.bf16.mxu0 0
    %555 = vmatpush1.bf16.msra.mxu0 0
    %556 = vmatprep.subr.bf16.mxu0 0
    %557 = vmatpush1.bf16.msra.mxu0 0
    %558 = vmatprep.subr.bf16.mxu0 0
    %559 = vmatpush1.bf16.msra.mxu0 0
    %560 = vmatprep.subr.bf16.mxu0 0
    %561 = vmatpush1.bf16.msra.mxu0 0
    %562 = vmatprep.mubr.bf16.mxu0 0
    %563 = vmatmul.mubr.bf16.gmra.mrb[0].mxu0 %v525
    %v564 = vpop.f32.mrb[0].mxu0
    %v565 = vadd.f32 %v504, %v564
    %v566 = vpop.f32.mrb[0].mxu0
    %v567 = vpop.f32.mrb[0].mxu0
    %v568 = vadd.f32 %v507, %v567
    %v569 = vpop.f32.mrb[0].mxu0
    %570 = vmatprep.mubr.bf16.mxu0 0
    %571 = vmatmul.mubr.bf16.gmra.mrb[0].mxu0 %v528
    %v572 = vpop.f32.mrb[0].mxu0
    %v573 = vadd.f32 %v512, %v572
    %v574 = vpop.f32.mrb[0].mxu0
    %v575 = vpop.f32.mrb[0].mxu0
    %v576 = vadd.f32 %v515, %v575
    %v577 = vpop.f32.mrb[0].mxu0
    %578 = vdwg.mxu0
    %v579 = vld [vmem:[%s1 + $0x30] sm:$0xf]
    %v580 = vld [vmem:[%s1 + $0x34] sm:$0xf]
    %v583 = vunpack.c.l.b16 %v579
    %v584 = vunpack.c.l.b16 %v580
    %v585 = vpack.c.b16 %v584, %v583
    %v587 = vsel %vm163, %v420, 0
    %v589 = vsel %vm163, %v421, 0
    %591 = vmatprep.subr.bf16.mxu0 0
    %592 = vmatpush1.bf16.msra.mxu0 %v585
    %593 = vmatprep.subr.bf16.mxu0 0
    %594 = vmatpush1.bf16.msra.mxu0 0
    %595 = vmatprep.subr.bf16.mxu0 0
    %596 = vmatpush1.bf16.msra.mxu0 0
    %597 = vmatprep.subr.bf16.mxu0 0
    %598 = vmatpush1.bf16.msra.mxu0 0
    %599 = vmatprep.subr.bf16.mxu0 0
    %600 = vmatpush1.bf16.msra.mxu0 0
    %601 = vmatprep.subr.bf16.mxu0 0
    %602 = vmatpush1.bf16.msra.mxu0 0
    %603 = vmatprep.subr.bf16.mxu0 0
    %604 = vmatpush1.bf16.msra.mxu0 0
    %605 = vmatprep.subr.bf16.mxu0 0
    %606 = vmatpush1.bf16.msra.mxu0 0
    %607 = vmatprep.subr.bf16.mxu0 0
    %608 = vmatpush1.bf16.msra.mxu0 0
    %609 = vmatprep.subr.bf16.mxu0 0
    %610 = vmatpush1.bf16.msra.mxu0 0
    %611 = vmatprep.subr.bf16.mxu0 0
    %612 = vmatpush1.bf16.msra.mxu0 0
    %613 = vmatprep.subr.bf16.mxu0 0
    %614 = vmatpush1.bf16.msra.mxu0 0
    %615 = vmatprep.subr.bf16.mxu0 0
    %616 = vmatpush1.bf16.msra.mxu0 0
    %617 = vmatprep.subr.bf16.mxu0 0
    %618 = vmatpush1.bf16.msra.mxu0 0
    %619 = vmatprep.subr.bf16.mxu0 0
    %620 = vmatpush1.bf16.msra.mxu0 0
    %621 = vmatprep.subr.bf16.mxu0 0
    %622 = vmatpush1.bf16.msra.mxu0 0
    %623 = vmatprep.mubr.bf16.mxu0 0
    %624 = vmatmul.mubr.bf16.gmra.mrb[0].mxu0 %v587
    %v625 = vpop.f32.mrb[0].mxu0
    %v626 = vadd.f32 0.0, %v625
    %v627 = vpop.f32.mrb[0].mxu0
    %v628 = vpop.f32.mrb[0].mxu0
    %v629 = vadd.f32 0.0, %v628
    %v630 = vpop.f32.mrb[0].mxu0
    %631 = vmatprep.mubr.bf16.mxu0 0
    %632 = vmatmul.mubr.bf16.gmra.mrb[0].mxu0 %v589
    %v633 = vpop.f32.mrb[0].mxu0
    %v634 = vadd.f32 0.0, %v633
    %v635 = vpop.f32.mrb[0].mxu0
    %v636 = vpop.f32.mrb[0].mxu0
    %v637 = vadd.f32 0.0, %v636
    %v638 = vpop.f32.mrb[0].mxu0
    %639 = vdwg.mxu0
    %v640 = vadd.f32 %v565, %v626
    %v641 = vadd.f32 %v568, %v629
    %v642 = vadd.f32 %v573, %v634
    %v643 = vadd.f32 %v576, %v637
    %v644 = vld [vmem:[%s2 + $0x2] sm:$0x1]
    %v645 = vlaneseq
    %v646 = vshrl.u32 %v645, 7
    %v647 = vsub.s32 0, %v646
    %v648 = vrot.slane %v644, %v647
    %v649 = vadd.f32 %v640, %v648
    %v650 = vadd.f32 %v641, %v648
    %v651 = vadd.f32 %v642, %v648
    %v652 = vadd.f32 %v643, %v648
    %v653 = vmax.f32 %v649, 0.0
    %v654 = vmax.f32 %v650, 0.0
    %v655 = vmax.f32 %v651, 0.0
    %v656 = vmax.f32 %v652, 0.0
    %v657 = vadd.f32 %v653, %v406
    %v658 = vadd.f32 %v654, %v409
    %v659 = vadd.f32 %v655, %v414
    %v660 = vadd.f32 %v656, %v417
    %v661 = vmax.f32 %v657, 0.0
    %v662 = vmax.f32 %v658, 0.0
    %v663 = vmax.f32 %v659, 0.0
    %v664 = vmax.f32 %v660, 0.0
    %v665 = vpack.c.bf16 %v662, %v661
    %v666 = vpack.c.bf16 %v664, %v663
    %v667 = vld [vmem:[%s1 + $0x38] sm:$0xf]
    %v668 = vld [vmem:[%s1 + $0x3c] sm:$0xf]
    %vm671 = vcmask 1041408
    %v672 = vrot.slane %v665, 6
    %v673 = vrot.slane %v666, 6
    %v674 = vsel %vm671, %v672, %v673
    %vm676 = vcmask 1041408
    %v678 = vsel %vm676, 0, %v672
    %vm680 = vcmp.ge.s32.totalorder %v71, 4
    %vm681 = vcmp.ge.s32.totalorder %v72, 4
    %vm682 = vcmp.ge.s32.totalorder %v73, 4
    %vm683 = vcmp.ge.s32.totalorder %v74, 4
    %vm684 = vmpackc.low %vm680, %vm680
    %vm685 = vmpackc.low %vm681, %vm681
    %vm686 = vmpackc.low %vm682, %vm682
    %vm687 = vmpackc.low %vm683, %vm683
    %v688 = vsel %vm684, 65537, 0
    %v689 = vsel %vm685, 65537, 0
    %v690 = vsel %vm686, 65537, 0
    %v691 = vsel %vm687, 65537, 0
    %v692 = vunpack.c.l.b16 %v688
    %v693 = vunpack.c.l.b16 %v689
    %v694 = vunpack.c.l.b16 %v690
    %v695 = vunpack.c.l.b16 %v691
    %v696 = vpack.c.b16 %v693, %v692
    %v697 = vpack.c.b16 %v695, %v694
    %vm698 = vcmp.ne.s16.totalorder %v696, 0
    %vm699 = vcmp.ne.s16.totalorder %v697, 0
    %v700 = vsel %vm698, %v678, 0
    %v701 = vsel %vm699, %v674, 0
    %v702 = vld [vmem:[%s1 + $0x40] sm:$0xf]
    %v703 = vld [vmem:[%s1 + $0x44] sm:$0xf]
    %v704 = vrot.slane %v665, 7
    %v705 = vrot.slane %v666, 7
    %v706 = vsel %vm81, %v704, %v705
    %v709 = vsel %vm86, 0, %v704
    %v711 = vsel %vm109, %v709, 0
    %v712 = vsel %vm110, %v706, 0
    %v715 = vunpack.c.l.b16 %v702
    %v716 = vunpack.c.l.b16 %v703
    %v717 = vpack.c.b16 %v716, %v715
    %v720 = vsel %vm163, %v711, 0
    %v723 = vsel %vm163, %v712, 0
    %725 = vmatprep.subr.bf16.mxu0 0
    %726 = vmatpush1.bf16.msra.mxu0 %v717
    %727 = vmatprep.subr.bf16.mxu0 0
    %728 = vmatpush1.bf16.msra.mxu0 0
    %729 = vmatprep.subr.bf16.mxu0 0
    %730 = vmatpush1.bf16.msra.mxu0 0
    %731 = vmatprep.subr.bf16.mxu0 0
    %732 = vmatpush1.bf16.msra.mxu0 0
    %733 = vmatprep.subr.bf16.mxu0 0
    %734 = vmatpush1.bf16.msra.mxu0 0
    %735 = vmatprep.subr.bf16.mxu0 0
    %736 = vmatpush1.bf16.msra.mxu0 0
    %737 = vmatprep.subr.bf16.mxu0 0
    %738 = vmatpush1.bf16.msra.mxu0 0
    %739 = vmatprep.subr.bf16.mxu0 0
    %740 = vmatpush1.bf16.msra.mxu0 0
    %741 = vmatprep.subr.bf16.mxu0 0
    %742 = vmatpush1.bf16.msra.mxu0 0
    %743 = vmatprep.subr.bf16.mxu0 0
    %744 = vmatpush1.bf16.msra.mxu0 0
    %745 = vmatprep.subr.bf16.mxu0 0
    %746 = vmatpush1.bf16.msra.mxu0 0
    %747 = vmatprep.subr.bf16.mxu0 0
    %748 = vmatpush1.bf16.msra.mxu0 0
    %749 = vmatprep.subr.bf16.mxu0 0
    %750 = vmatpush1.bf16.msra.mxu0 0
    %751 = vmatprep.subr.bf16.mxu0 0
    %752 = vmatpush1.bf16.msra.mxu0 0
    %753 = vmatprep.subr.bf16.mxu0 0
    %754 = vmatpush1.bf16.msra.mxu0 0
    %755 = vmatprep.subr.bf16.mxu0 0
    %756 = vmatpush1.bf16.msra.mxu0 0
    %757 = vmatprep.mubr.bf16.mxu0 0
    %758 = vmatmul.mubr.bf16.gmra.mrb[0].mxu0 %v720
    %v759 = vpop.f32.mrb[0].mxu0
    %v760 = vadd.f32 0.0, %v759
    %v761 = vpop.f32.mrb[0].mxu0
    %v762 = vpop.f32.mrb[0].mxu0
    %v763 = vadd.f32 0.0, %v762
    %v764 = vpop.f32.mrb[0].mxu0
    %765 = vmatprep.mubr.bf16.mxu0 0
    %766 = vmatmul.mubr.bf16.gmra.mrb[0].mxu0 %v723
    %v767 = vpop.f32.mrb[0].mxu0
    %v768 = vadd.f32 0.0, %v767
    %v769 = vpop.f32.mrb[0].mxu0
    %v770 = vpop.f32.mrb[0].mxu0
    %v771 = vadd.f32 0.0, %v770
    %v772 = vpop.f32.mrb[0].mxu0
    %773 = vdwg.mxu0
    %v776 = vunpack.c.l.b16 %v667
    %v777 = vunpack.c.l.b16 %v668
    %v778 = vpack.c.b16 %v777, %v776
    %v781 = vsel %vm163, %v700, 0
    %v784 = vsel %vm163, %v701, 0
    %786 = vmatprep.subr.bf16.mxu0 0
    %787 = vmatpush1.bf16.msra.mxu0 %v778
    %788 = vmatprep.subr.bf16.mxu0 0
    %789 = vmatpush1.bf16.msra.mxu0 0
    %790 = vmatprep.subr.bf16.mxu0 0
    %791 = vmatpush1.bf16.msra.mxu0 0
    %792 = vmatprep.subr.bf16.mxu0 0
    %793 = vmatpush1.bf16.msra.mxu0 0
    %794 = vmatprep.subr.bf16.mxu0 0
    %795 = vmatpush1.bf16.msra.mxu0 0
    %796 = vmatprep.subr.bf16.mxu0 0
    %797 = vmatpush1.bf16.msra.mxu0 0
    %798 = vmatprep.subr.bf16.mxu0 0
    %799 = vmatpush1.bf16.msra.mxu0 0
    %800 = vmatprep.subr.bf16.mxu0 0
    %801 = vmatpush1.bf16.msra.mxu0 0
    %802 = vmatprep.subr.bf16.mxu0 0
    %803 = vmatpush1.bf16.msra.mxu0 0
    %804 = vmatprep.subr.bf16.mxu0 0
    %805 = vmatpush1.bf16.msra.mxu0 0
    %806 = vmatprep.subr.bf16.mxu0 0
    %807 = vmatpush1.bf16.msra.mxu0 0
    %808 = vmatprep.subr.bf16.mxu0 0
    %809 = vmatpush1.bf16.msra.mxu0 0
    %810 = vmatprep.subr.bf16.mxu0 0
    %811 = vmatpush1.bf16.msra.mxu0 0
    %812 = vmatprep.subr.bf16.mxu0 0
    %813 = vmatpush1.bf16.msra.mxu0 0
    %814 = vmatprep.subr.bf16.mxu0 0
    %815 = vmatpush1.bf16.msra.mxu0 0
    %816 = vmatprep.subr.bf16.mxu0 0
    %817 = vmatpush1.bf16.msra.mxu0 0
    %818 = vmatprep.mubr.bf16.mxu0 0
    %819 = vmatmul.mubr.bf16.gmra.mrb[0].mxu0 %v781
    %v820 = vpop.f32.mrb[0].mxu0
    %v821 = vadd.f32 %v760, %v820
    %v822 = vpop.f32.mrb[0].mxu0
    %v823 = vpop.f32.mrb[0].mxu0
    %v824 = vadd.f32 %v763, %v823
    %v825 = vpop.f32.mrb[0].mxu0
    %826 = vmatprep.mubr.bf16.mxu0 0
    %827 = vmatmul.mubr.bf16.gmra.mrb[0].mxu0 %v784
    %v828 = vpop.f32.mrb[0].mxu0
    %v829 = vadd.f32 %v768, %v828
    %v830 = vpop.f32.mrb[0].mxu0
    %v831 = vpop.f32.mrb[0].mxu0
    %v832 = vadd.f32 %v771, %v831
    %v833 = vpop.f32.mrb[0].mxu0
    %834 = vdwg.mxu0
    %v835 = vld [vmem:[%s1 + $0x48] sm:$0xf]
    %v836 = vld [vmem:[%s1 + $0x4c] sm:$0xf]
    %v839 = vunpack.c.l.b16 %v835
    %v840 = vunpack.c.l.b16 %v836
    %v841 = vpack.c.b16 %v840, %v839
    %v844 = vsel %vm163, %v665, 0
    %v847 = vsel %vm163, %v666, 0
    %849 = vmatprep.subr.bf16.mxu0 0
    %850 = vmatpush1.bf16.msra.mxu0 %v841
    %851 = vmatprep.subr.bf16.mxu0 0
    %852 = vmatpush1.bf16.msra.mxu0 0
    %853 = vmatprep.subr.bf16.mxu0 0
    %854 = vmatpush1.bf16.msra.mxu0 0
    %855 = vmatprep.subr.bf16.mxu0 0
    %856 = vmatpush1.bf16.msra.mxu0 0
    %857 = vmatprep.subr.bf16.mxu0 0
    %858 = vmatpush1.bf16.msra.mxu0 0
    %859 = vmatprep.subr.bf16.mxu0 0
    %860 = vmatpush1.bf16.msra.mxu0 0
    %861 = vmatprep.subr.bf16.mxu0 0
    %862 = vmatpush1.bf16.msra.mxu0 0
    %863 = vmatprep.subr.bf16.mxu0 0
    %864 = vmatpush1.bf16.msra.mxu0 0
    %865 = vmatprep.subr.bf16.mxu0 0
    %866 = vmatpush1.bf16.msra.mxu0 0
    %867 = vmatprep.subr.bf16.mxu0 0
    %868 = vmatpush1.bf16.msra.mxu0 0
    %869 = vmatprep.subr.bf16.mxu0 0
    %870 = vmatpush1.bf16.msra.mxu0 0
    %871 = vmatprep.subr.bf16.mxu0 0
    %872 = vmatpush1.bf16.msra.mxu0 0
    %873 = vmatprep.subr.bf16.mxu0 0
    %874 = vmatpush1.bf16.msra.mxu0 0
    %875 = vmatprep.subr.bf16.mxu0 0
    %876 = vmatpush1.bf16.msra.mxu0 0
    %877 = vmatprep.subr.bf16.mxu0 0
    %878 = vmatpush1.bf16.msra.mxu0 0
    %879 = vmatprep.subr.bf16.mxu0 0
    %880 = vmatpush1.bf16.msra.mxu0 0
    %881 = vmatprep.mubr.bf16.mxu0 0
    %882 = vmatmul.mubr.bf16.gmra.mrb[0].mxu0 %v844
    %v883 = vpop.f32.mrb[0].mxu0
    %v884 = vadd.f32 0.0, %v883
    %v885 = vpop.f32.mrb[0].mxu0
    %v886 = vpop.f32.mrb[0].mxu0
    %v887 = vadd.f32 0.0, %v886
    %v888 = vpop.f32.mrb[0].mxu0
    %889 = vmatprep.mubr.bf16.mxu0 0
    %890 = vmatmul.mubr.bf16.gmra.mrb[0].mxu0 %v847
    %v891 = vpop.f32.mrb[0].mxu0
    %v892 = vadd.f32 0.0, %v891
    %v893 = vpop.f32.mrb[0].mxu0
    %v894 = vpop.f32.mrb[0].mxu0
    %v895 = vadd.f32 0.0, %v894
    %v896 = vpop.f32.mrb[0].mxu0
    %897 = vdwg.mxu0
    %v898 = vadd.f32 %v821, %v884
    %v899 = vadd.f32 %v824, %v887
    %v900 = vadd.f32 %v829, %v892
    %v901 = vadd.f32 %v832, %v895
    %v902 = vld [vmem:[%s2 + $0x3] sm:$0x1]
    %v903 = vlaneseq
    %v904 = vshrl.u32 %v903, 7
    %v905 = vsub.s32 0, %v904
    %v906 = vrot.slane %v902, %v905
    %v907 = vadd.f32 %v898, %v906
    %v908 = vadd.f32 %v899, %v906
    %v909 = vadd.f32 %v900, %v906
    %v910 = vadd.f32 %v901, %v906
    %v911 = vmax.f32 %v907, 0.0
    %v912 = vmax.f32 %v908, 0.0
    %v913 = vmax.f32 %v909, 0.0
    %v914 = vmax.f32 %v910, 0.0
    %v915 = vpack.c.bf16 %v912, %v911
    %v916 = vpack.c.bf16 %v914, %v913
    %v917 = vld [vmem:[%s1 + $0x50] sm:$0xf]
    %v918 = vld [vmem:[%s1 + $0x54] sm:$0xf]
    %v921 = vrot.slane %v915, 6
    %v922 = vrot.slane %v916, 6
    %v923 = vsel %vm671, %v921, %v922
    %v926 = vsel %vm676, 0, %v921
    %v928 = vsel %vm698, %v926, 0
    %v929 = vsel %vm699, %v923, 0
    %v930 = vld [vmem:[%s1 + $0x58] sm:$0xf]
    %v931 = vld [vmem:[%s1 + $0x5c] sm:$0xf]
    %v932 = vrot.slane %v915, 7
    %v933 = vrot.slane %v916, 7
    %v934 = vsel %vm81, %v932, %v933
    %v937 = vsel %vm86, 0, %v932
    %v939 = vsel %vm109, %v937, 0
    %v940 = vsel %vm110, %v934, 0
    %v943 = vunpack.c.l.b16 %v930
    %v944 = vunpack.c.l.b16 %v931
    %v945 = vpack.c.b16 %v944, %v943
    %v948 = vsel %vm163, %v939, 0
    %v951 = vsel %vm163, %v940, 0
    %953 = vmatprep.subr.bf16.mxu0 0
    %954 = vmatpush1.bf16.msra.mxu0 %v945
    %955 = vmatprep.subr.bf16.mxu0 0
    %956 = vmatpush1.bf16.msra.mxu0 0
    %957 = vmatprep.subr.bf16.mxu0 0
    %958 = vmatpush1.bf16.msra.mxu0 0
    %959 = vmatprep.subr.bf16.mxu0 0
    %960 = vmatpush1.bf16.msra.mxu0 0
    %961 = vmatprep.subr.bf16.mxu0 0
    %962 = vmatpush1.bf16.msra.mxu0 0
    %963 = vmatprep.subr.bf16.mxu0 0
    %964 = vmatpush1.bf16.msra.mxu0 0
    %965 = vmatprep.subr.bf16.mxu0 0
    %966 = vmatpush1.bf16.msra.mxu0 0
    %967 = vmatprep.subr.bf16.mxu0 0
    %968 = vmatpush1.bf16.msra.mxu0 0
    %969 = vmatprep.subr.bf16.mxu0 0
    %970 = vmatpush1.bf16.msra.mxu0 0
    %971 = vmatprep.subr.bf16.mxu0 0
    %972 = vmatpush1.bf16.msra.mxu0 0
    %973 = vmatprep.subr.bf16.mxu0 0
    %974 = vmatpush1.bf16.msra.mxu0 0
    %975 = vmatprep.subr.bf16.mxu0 0
    %976 = vmatpush1.bf16.msra.mxu0 0
    %977 = vmatprep.subr.bf16.mxu0 0
    %978 = vmatpush1.bf16.msra.mxu0 0
    %979 = vmatprep.subr.bf16.mxu0 0
    %980 = vmatpush1.bf16.msra.mxu0 0
    %981 = vmatprep.subr.bf16.mxu0 0
    %982 = vmatpush1.bf16.msra.mxu0 0
    %983 = vmatprep.subr.bf16.mxu0 0
    %984 = vmatpush1.bf16.msra.mxu0 0
    %985 = vmatprep.mubr.bf16.mxu0 0
    %986 = vmatmul.mubr.bf16.gmra.mrb[0].mxu0 %v948
    %v987 = vpop.f32.mrb[0].mxu0
    %v988 = vadd.f32 0.0, %v987
    %v989 = vpop.f32.mrb[0].mxu0
    %v990 = vpop.f32.mrb[0].mxu0
    %v991 = vadd.f32 0.0, %v990
    %v992 = vpop.f32.mrb[0].mxu0
    %993 = vmatprep.mubr.bf16.mxu0 0
    %994 = vmatmul.mubr.bf16.gmra.mrb[0].mxu0 %v951
    %v995 = vpop.f32.mrb[0].mxu0
    %v996 = vadd.f32 0.0, %v995
    %v997 = vpop.f32.mrb[0].mxu0
    %v998 = vpop.f32.mrb[0].mxu0
    %v999 = vadd.f32 0.0, %v998
    %v1000 = vpop.f32.mrb[0].mxu0
    %1001 = vdwg.mxu0
    %v1004 = vunpack.c.l.b16 %v917
    %v1005 = vunpack.c.l.b16 %v918
    %v1006 = vpack.c.b16 %v1005, %v1004
    %v1009 = vsel %vm163, %v928, 0
    %v1012 = vsel %vm163, %v929, 0
    %1014 = vmatprep.subr.bf16.mxu0 0
    %1015 = vmatpush1.bf16.msra.mxu0 %v1006
    %1016 = vmatprep.subr.bf16.mxu0 0
    %1017 = vmatpush1.bf16.msra.mxu0 0
    %1018 = vmatprep.subr.bf16.mxu0 0
    %1019 = vmatpush1.bf16.msra.mxu0 0
    %1020 = vmatprep.subr.bf16.mxu0 0
    %1021 = vmatpush1.bf16.msra.mxu0 0
    %1022 = vmatprep.subr.bf16.mxu0 0
    %1023 = vmatpush1.bf16.msra.mxu0 0
    %1024 = vmatprep.subr.bf16.mxu0 0
    %1025 = vmatpush1.bf16.msra.mxu0 0
    %1026 = vmatprep.subr.bf16.mxu0 0
    %1027 = vmatpush1.bf16.msra.mxu0 0
    %1028 = vmatprep.subr.bf16.mxu0 0
    %1029 = vmatpush1.bf16.msra.mxu0 0
    %1030 = vmatprep.subr.bf16.mxu0 0
    %1031 = vmatpush1.bf16.msra.mxu0 0
    %1032 = vmatprep.subr.bf16.mxu0 0
    %1033 = vmatpush1.bf16.msra.mxu0 0
    %1034 = vmatprep.subr.bf16.mxu0 0
    %1035 = vmatpush1.bf16.msra.mxu0 0
    %1036 = vmatprep.subr.bf16.mxu0 0
    %1037 = vmatpush1.bf16.msra.mxu0 0
    %1038 = vmatprep.subr.bf16.mxu0 0
    %1039 = vmatpush1.bf16.msra.mxu0 0
    %1040 = vmatprep.subr.bf16.mxu0 0
    %1041 = vmatpush1.bf16.msra.mxu0 0
    %1042 = vmatprep.subr.bf16.mxu0 0
    %1043 = vmatpush1.bf16.msra.mxu0 0
    %1044 = vmatprep.subr.bf16.mxu0 0
    %1045 = vmatpush1.bf16.msra.mxu0 0
    %1046 = vmatprep.mubr.bf16.mxu0 0
    %1047 = vmatmul.mubr.bf16.gmra.mrb[0].mxu0 %v1009
    %v1048 = vpop.f32.mrb[0].mxu0
    %v1049 = vadd.f32 %v988, %v1048
    %v1050 = vpop.f32.mrb[0].mxu0
    %v1051 = vpop.f32.mrb[0].mxu0
    %v1052 = vadd.f32 %v991, %v1051
    %v1053 = vpop.f32.mrb[0].mxu0
    %1054 = vmatprep.mubr.bf16.mxu0 0
    %1055 = vmatmul.mubr.bf16.gmra.mrb[0].mxu0 %v1012
    %v1056 = vpop.f32.mrb[0].mxu0
    %v1057 = vadd.f32 %v996, %v1056
    %v1058 = vpop.f32.mrb[0].mxu0
    %v1059 = vpop.f32.mrb[0].mxu0
    %v1060 = vadd.f32 %v999, %v1059
    %v1061 = vpop.f32.mrb[0].mxu0
    %1062 = vdwg.mxu0
    %v1063 = vld [vmem:[%s1 + $0x60] sm:$0xf]
    %v1064 = vld [vmem:[%s1 + $0x64] sm:$0xf]
    %v1067 = vunpack.c.l.b16 %v1063
    %v1068 = vunpack.c.l.b16 %v1064
    %v1069 = vpack.c.b16 %v1068, %v1067
    %v1072 = vsel %vm163, %v915, 0
    %v1075 = vsel %vm163, %v916, 0
    %1077 = vmatprep.subr.bf16.mxu0 0
    %1078 = vmatpush1.bf16.msra.mxu0 %v1069
    %1079 = vmatprep.subr.bf16.mxu0 0
    %1080 = vmatpush1.bf16.msra.mxu0 0
    %1081 = vmatprep.subr.bf16.mxu0 0
    %1082 = vmatpush1.bf16.msra.mxu0 0
    %1083 = vmatprep.subr.bf16.mxu0 0
    %1084 = vmatpush1.bf16.msra.mxu0 0
    %1085 = vmatprep.subr.bf16.mxu0 0
    %1086 = vmatpush1.bf16.msra.mxu0 0
    %1087 = vmatprep.subr.bf16.mxu0 0
    %1088 = vmatpush1.bf16.msra.mxu0 0
    %1089 = vmatprep.subr.bf16.mxu0 0
    %1090 = vmatpush1.bf16.msra.mxu0 0
    %1091 = vmatprep.subr.bf16.mxu0 0
    %1092 = vmatpush1.bf16.msra.mxu0 0
    %1093 = vmatprep.subr.bf16.mxu0 0
    %1094 = vmatpush1.bf16.msra.mxu0 0
    %1095 = vmatprep.subr.bf16.mxu0 0
    %1096 = vmatpush1.bf16.msra.mxu0 0
    %1097 = vmatprep.subr.bf16.mxu0 0
    %1098 = vmatpush1.bf16.msra.mxu0 0
    %1099 = vmatprep.subr.bf16.mxu0 0
    %1100 = vmatpush1.bf16.msra.mxu0 0
    %1101 = vmatprep.subr.bf16.mxu0 0
    %1102 = vmatpush1.bf16.msra.mxu0 0
    %1103 = vmatprep.subr.bf16.mxu0 0
    %1104 = vmatpush1.bf16.msra.mxu0 0
    %1105 = vmatprep.subr.bf16.mxu0 0
    %1106 = vmatpush1.bf16.msra.mxu0 0
    %1107 = vmatprep.subr.bf16.mxu0 0
    %1108 = vmatpush1.bf16.msra.mxu0 0
    %1109 = vmatprep.mubr.bf16.mxu0 0
    %1110 = vmatmul.mubr.bf16.gmra.mrb[0].mxu0 %v1072
    %v1111 = vpop.f32.mrb[0].mxu0
    %v1112 = vadd.f32 0.0, %v1111
    %v1113 = vpop.f32.mrb[0].mxu0
    %v1114 = vpop.f32.mrb[0].mxu0
    %v1115 = vadd.f32 0.0, %v1114
    %v1116 = vpop.f32.mrb[0].mxu0
    %1117 = vmatprep.mubr.bf16.mxu0 0
    %1118 = vmatmul.mubr.bf16.gmra.mrb[0].mxu0 %v1075
    %v1119 = vpop.f32.mrb[0].mxu0
    %v1120 = vadd.f32 0.0, %v1119
    %v1121 = vpop.f32.mrb[0].mxu0
    %v1122 = vpop.f32.mrb[0].mxu0
    %v1123 = vadd.f32 0.0, %v1122
    %v1124 = vpop.f32.mrb[0].mxu0
    %1125 = vdwg.mxu0
    %v1126 = vadd.f32 %v1049, %v1112
    %v1127 = vadd.f32 %v1052, %v1115
    %v1128 = vadd.f32 %v1057, %v1120
    %v1129 = vadd.f32 %v1060, %v1123
    %v1130 = vld [vmem:[%s2 + $0x4] sm:$0x1]
    %v1131 = vlaneseq
    %v1132 = vshrl.u32 %v1131, 7
    %v1133 = vsub.s32 0, %v1132
    %v1134 = vrot.slane %v1130, %v1133
    %v1135 = vadd.f32 %v1126, %v1134
    %v1136 = vadd.f32 %v1127, %v1134
    %v1137 = vadd.f32 %v1128, %v1134
    %v1138 = vadd.f32 %v1129, %v1134
    %v1139 = vmax.f32 %v1135, 0.0
    %v1140 = vmax.f32 %v1136, 0.0
    %v1141 = vmax.f32 %v1137, 0.0
    %v1142 = vmax.f32 %v1138, 0.0
    %v1143 = vadd.f32 %v1139, %v661
    %v1144 = vadd.f32 %v1140, %v662
    %v1145 = vadd.f32 %v1141, %v663
    %v1146 = vadd.f32 %v1142, %v664
    %v1147 = vmax.f32 %v1143, 0.0
    %v1148 = vmax.f32 %v1144, 0.0
    %v1149 = vmax.f32 %v1145, 0.0
    %v1150 = vmax.f32 %v1146, 0.0
    %v1151 = vpack.c.bf16 %v1148, %v1147
    %v1152 = vpack.c.bf16 %v1150, %v1149
    %v1153 = vld [vmem:[%s1 + $0x68] sm:$0xf]
    %v1154 = vld [vmem:[%s1 + $0x6c] sm:$0xf]
    %vm1157 = vcmask 1043456
    %v1158 = vrot.slane %v1151, 4
    %v1159 = vrot.slane %v1152, 4
    %v1160 = vsel %vm1157, %v1158, %v1159
    %vm1162 = vcmask 1043456
    %v1164 = vsel %vm1162, 0, %v1158
    %vm1166 = vcmp.ge.s32.totalorder %v71, 8
    %vm1167 = vcmp.ge.s32.totalorder %v72, 8
    %vm1168 = vcmp.ge.s32.totalorder %v73, 8
    %vm1169 = vcmp.ge.s32.totalorder %v74, 8
    %vm1170 = vmpackc.low %vm1166, %vm1166
    %vm1171 = vmpackc.low %vm1167, %vm1167
    %vm1172 = vmpackc.low %vm1168, %vm1168
    %vm1173 = vmpackc.low %vm1169, %vm1169
    %v1174 = vsel %vm1170, 65537, 0
    %v1175 = vsel %vm1171, 65537, 0
    %v1176 = vsel %vm1172, 65537, 0
    %v1177 = vsel %vm1173, 65537, 0
    %v1178 = vunpack.c.l.b16 %v1174
    %v1179 = vunpack.c.l.b16 %v1175
    %v1180 = vunpack.c.l.b16 %v1176
    %v1181 = vunpack.c.l.b16 %v1177
    %v1182 = vpack.c.b16 %v1179, %v1178
    %v1183 = vpack.c.b16 %v1181, %v1180
    %vm1184 = vcmp.ne.s16.totalorder %v1182, 0
    %vm1185 = vcmp.ne.s16.totalorder %v1183, 0
    %v1186 = vsel %vm1184, %v1164, 0
    %v1187 = vsel %vm1185, %v1160, 0
    %v1188 = vld [vmem:[%s1 + $0x70] sm:$0xf]
    %v1189 = vld [vmem:[%s1 + $0x74] sm:$0xf]
    %v1190 = vrot.slane %v1151, 6
    %v1191 = vrot.slane %v1152, 6
    %v1192 = vsel %vm671, %v1190, %v1191
    %v1195 = vsel %vm676, 0, %v1190
    %v1197 = vsel %vm698, %v1195, 0
    %v1198 = vsel %vm699, %v1192, 0
    %v1201 = vunpack.c.l.b16 %v1188
    %v1202 = vunpack.c.l.b16 %v1189
    %v1203 = vpack.c.b16 %v1202, %v1201
    %v1206 = vsel %vm163, %v1197, 0
    %v1209 = vsel %vm163, %v1198, 0
    %1211 = vmatprep.subr.bf16.mxu0 0
    %1212 = vmatpush1.bf16.msra.mxu0 %v1203
    %1213 = vmatprep.subr.bf16.mxu0 0
    %1214 = vmatpush1.bf16.msra.mxu0 0
    %1215 = vmatprep.subr.bf16.mxu0 0
    %1216 = vmatpush1.bf16.msra.mxu0 0
    %1217 = vmatprep.subr.bf16.mxu0 0
    %1218 = vmatpush1.bf16.msra.mxu0 0
    %1219 = vmatprep.subr.bf16.mxu0 0
    %1220 = vmatpush1.bf16.msra.mxu0 0
    %1221 = vmatprep.subr.bf16.mxu0 0
    %1222 = vmatpush1.bf16.msra.mxu0 0
    %1223 = vmatprep.subr.bf16.mxu0 0
    %1224 = vmatpush1.bf16.msra.mxu0 0
    %1225 = vmatprep.subr.bf16.mxu0 0
    %1226 = vmatpush1.bf16.msra.mxu0 0
    %1227 = vmatprep.subr.bf16.mxu0 0
    %1228 = vmatpush1.bf16.msra.mxu0 0
    %1229 = vmatprep.subr.bf16.mxu0 0
    %1230 = vmatpush1.bf16.msra.mxu0 0
    %1231 = vmatprep.subr.bf16.mxu0 0
    %1232 = vmatpush1.bf16.msra.mxu0 0
    %1233 = vmatprep.subr.bf16.mxu0 0
    %1234 = vmatpush1.bf16.msra.mxu0 0
    %1235 = vmatprep.subr.bf16.mxu0 0
    %1236 = vmatpush1.bf16.msra.mxu0 0
    %1237 = vmatprep.subr.bf16.mxu0 0
    %1238 = vmatpush1.bf16.msra.mxu0 0
    %1239 = vmatprep.subr.bf16.mxu0 0
    %1240 = vmatpush1.bf16.msra.mxu0 0
    %1241 = vmatprep.subr.bf16.mxu0 0
    %1242 = vmatpush1.bf16.msra.mxu0 0
    %1243 = vmatprep.mubr.bf16.mxu0 0
    %1244 = vmatmul.mubr.bf16.gmra.mrb[0].mxu0 %v1206
    %v1245 = vpop.f32.mrb[0].mxu0
    %v1246 = vadd.f32 0.0, %v1245
    %v1247 = vpop.f32.mrb[0].mxu0
    %v1248 = vpop.f32.mrb[0].mxu0
    %v1249 = vadd.f32 0.0, %v1248
    %v1250 = vpop.f32.mrb[0].mxu0
    %1251 = vmatprep.mubr.bf16.mxu0 0
    %1252 = vmatmul.mubr.bf16.gmra.mrb[0].mxu0 %v1209
    %v1253 = vpop.f32.mrb[0].mxu0
    %v1254 = vadd.f32 0.0, %v1253
    %v1255 = vpop.f32.mrb[0].mxu0
    %v1256 = vpop.f32.mrb[0].mxu0
    %v1257 = vadd.f32 0.0, %v1256
    %v1258 = vpop.f32.mrb[0].mxu0
    %1259 = vdwg.mxu0
    %v1262 = vunpack.c.l.b16 %v1153
    %v1263 = vunpack.c.l.b16 %v1154
    %v1264 = vpack.c.b16 %v1263, %v1262
    %v1267 = vsel %vm163, %v1186, 0
    %v1270 = vsel %vm163, %v1187, 0
    %1272 = vmatprep.subr.bf16.mxu0 0
    %1273 = vmatpush1.bf16.msra.mxu0 %v1264
    %1274 = vmatprep.subr.bf16.mxu0 0
    %1275 = vmatpush1.bf16.msra.mxu0 0
    %1276 = vmatprep.subr.bf16.mxu0 0
    %1277 = vmatpush1.bf16.msra.mxu0 0
    %1278 = vmatprep.subr.bf16.mxu0 0
    %1279 = vmatpush1.bf16.msra.mxu0 0
    %1280 = vmatprep.subr.bf16.mxu0 0
    %1281 = vmatpush1.bf16.msra.mxu0 0
    %1282 = vmatprep.subr.bf16.mxu0 0
    %1283 = vmatpush1.bf16.msra.mxu0 0
    %1284 = vmatprep.subr.bf16.mxu0 0
    %1285 = vmatpush1.bf16.msra.mxu0 0
    %1286 = vmatprep.subr.bf16.mxu0 0
    %1287 = vmatpush1.bf16.msra.mxu0 0
    %1288 = vmatprep.subr.bf16.mxu0 0
    %1289 = vmatpush1.bf16.msra.mxu0 0
    %1290 = vmatprep.subr.bf16.mxu0 0
    %1291 = vmatpush1.bf16.msra.mxu0 0
    %1292 = vmatprep.subr.bf16.mxu0 0
    %1293 = vmatpush1.bf16.msra.mxu0 0
    %1294 = vmatprep.subr.bf16.mxu0 0
    %1295 = vmatpush1.bf16.msra.mxu0 0
    %1296 = vmatprep.subr.bf16.mxu0 0
    %1297 = vmatpush1.bf16.msra.mxu0 0
    %1298 = vmatprep.subr.bf16.mxu0 0
    %1299 = vmatpush1.bf16.msra.mxu0 0
    %1300 = vmatprep.subr.bf16.mxu0 0
    %1301 = vmatpush1.bf16.msra.mxu0 0
    %1302 = vmatprep.subr.bf16.mxu0 0
    %1303 = vmatpush1.bf16.msra.mxu0 0
    %1304 = vmatprep.mubr.bf16.mxu0 0
    %1305 = vmatmul.mubr.bf16.gmra.mrb[0].mxu0 %v1267
    %v1306 = vpop.f32.mrb[0].mxu0
    %v1307 = vadd.f32 %v1246, %v1306
    %v1308 = vpop.f32.mrb[0].mxu0
    %v1309 = vpop.f32.mrb[0].mxu0
    %v1310 = vadd.f32 %v1249, %v1309
    %v1311 = vpop.f32.mrb[0].mxu0
    %1312 = vmatprep.mubr.bf16.mxu0 0
    %1313 = vmatmul.mubr.bf16.gmra.mrb[0].mxu0 %v1270
    %v1314 = vpop.f32.mrb[0].mxu0
    %v1315 = vadd.f32 %v1254, %v1314
    %v1316 = vpop.f32.mrb[0].mxu0
    %v1317 = vpop.f32.mrb[0].mxu0
    %v1318 = vadd.f32 %v1257, %v1317
    %v1319 = vpop.f32.mrb[0].mxu0
    %1320 = vdwg.mxu0
    %v1321 = vld [vmem:[%s1 + $0x78] sm:$0xf]
    %v1322 = vld [vmem:[%s1 + $0x7c] sm:$0xf]
    %v1325 = vunpack.c.l.b16 %v1321
    %v1326 = vunpack.c.l.b16 %v1322
    %v1327 = vpack.c.b16 %v1326, %v1325
    %v1330 = vsel %vm163, %v1151, 0
    %v1333 = vsel %vm163, %v1152, 0
    %1335 = vmatprep.subr.bf16.mxu0 0
    %1336 = vmatpush1.bf16.msra.mxu0 %v1327
    %1337 = vmatprep.subr.bf16.mxu0 0
    %1338 = vmatpush1.bf16.msra.mxu0 0
    %1339 = vmatprep.subr.bf16.mxu0 0
    %1340 = vmatpush1.bf16.msra.mxu0 0
    %1341 = vmatprep.subr.bf16.mxu0 0
    %1342 = vmatpush1.bf16.msra.mxu0 0
    %1343 = vmatprep.subr.bf16.mxu0 0
    %1344 = vmatpush1.bf16.msra.mxu0 0
    %1345 = vmatprep.subr.bf16.mxu0 0
    %1346 = vmatpush1.bf16.msra.mxu0 0
    %1347 = vmatprep.subr.bf16.mxu0 0
    %1348 = vmatpush1.bf16.msra.mxu0 0
    %1349 = vmatprep.subr.bf16.mxu0 0
    %1350 = vmatpush1.bf16.msra.mxu0 0
    %1351 = vmatprep.subr.bf16.mxu0 0
    %1352 = vmatpush1.bf16.msra.mxu0 0
    %1353 = vmatprep.subr.bf16.mxu0 0
    %1354 = vmatpush1.bf16.msra.mxu0 0
    %1355 = vmatprep.subr.bf16.mxu0 0
    %1356 = vmatpush1.bf16.msra.mxu0 0
    %1357 = vmatprep.subr.bf16.mxu0 0
    %1358 = vmatpush1.bf16.msra.mxu0 0
    %1359 = vmatprep.subr.bf16.mxu0 0
    %1360 = vmatpush1.bf16.msra.mxu0 0
    %1361 = vmatprep.subr.bf16.mxu0 0
    %1362 = vmatpush1.bf16.msra.mxu0 0
    %1363 = vmatprep.subr.bf16.mxu0 0
    %1364 = vmatpush1.bf16.msra.mxu0 0
    %1365 = vmatprep.subr.bf16.mxu0 0
    %1366 = vmatpush1.bf16.msra.mxu0 0
    %1367 = vmatprep.mubr.bf16.mxu0 0
    %1368 = vmatmul.mubr.bf16.gmra.mrb[0].mxu0 %v1330
    %v1369 = vpop.f32.mrb[0].mxu0
    %v1370 = vadd.f32 0.0, %v1369
    %v1371 = vpop.f32.mrb[0].mxu0
    %v1372 = vpop.f32.mrb[0].mxu0
    %v1373 = vadd.f32 0.0, %v1372
    %v1374 = vpop.f32.mrb[0].mxu0
    %1375 = vmatprep.mubr.bf16.mxu0 0
    %1376 = vmatmul.mubr.bf16.gmra.mrb[0].mxu0 %v1333
    %v1377 = vpop.f32.mrb[0].mxu0
    %v1378 = vadd.f32 0.0, %v1377
    %v1379 = vpop.f32.mrb[0].mxu0
    %v1380 = vpop.f32.mrb[0].mxu0
    %v1381 = vadd.f32 0.0, %v1380
    %v1382 = vpop.f32.mrb[0].mxu0
    %1383 = vdwg.mxu0
    %v1384 = vadd.f32 %v1307, %v1370
    %v1385 = vadd.f32 %v1310, %v1373
    %v1386 = vadd.f32 %v1315, %v1378
    %v1387 = vadd.f32 %v1318, %v1381
    %v1388 = vld [vmem:[%s2 + $0x5] sm:$0x1]
    %v1389 = vlaneseq
    %v1390 = vshrl.u32 %v1389, 7
    %v1391 = vsub.s32 0, %v1390
    %v1392 = vrot.slane %v1388, %v1391
    %v1393 = vadd.f32 %v1384, %v1392
    %v1394 = vadd.f32 %v1385, %v1392
    %v1395 = vadd.f32 %v1386, %v1392
    %v1396 = vadd.f32 %v1387, %v1392
    %v1397 = vmax.f32 %v1393, 0.0
    %v1398 = vmax.f32 %v1394, 0.0
    %v1399 = vmax.f32 %v1395, 0.0
    %v1400 = vmax.f32 %v1396, 0.0
    %v1401 = vld [vmem:[%s1 + $0x80] sm:$0xf]
    %v1402 = vld [vmem:[%s1 + $0x84] sm:$0xf]
    %v1403 = vld [vmem:[%s2 + $0x6] sm:$0x1]
    %v1404 = vlaneseq
    %v1405 = vshrl.u32 %v1404, 7
    %v1406 = vsub.s32 0, %v1405
    %v1407 = vrot.slane %v1403, %v1406
    %v1410 = vunpack.c.l.b16 %v1401
    %v1411 = vunpack.c.l.b16 %v1402
    %v1412 = vpack.c.b16 %v1411, %v1410
    %1414 = vmatprep.subr.bf16.mxu0 0
    %1415 = vmatpush1.bf16.msra.mxu0 %v1412
    %1416 = vmatprep.subr.bf16.mxu0 0
    %1417 = vmatpush1.bf16.msra.mxu0 0
    %1418 = vmatprep.subr.bf16.mxu0 0
    %1419 = vmatpush1.bf16.msra.mxu0 0
    %1420 = vmatprep.subr.bf16.mxu0 0
    %1421 = vmatpush1.bf16.msra.mxu0 0
    %1422 = vmatprep.subr.bf16.mxu0 0
    %1423 = vmatpush1.bf16.msra.mxu0 0
    %1424 = vmatprep.subr.bf16.mxu0 0
    %1425 = vmatpush1.bf16.msra.mxu0 0
    %1426 = vmatprep.subr.bf16.mxu0 0
    %1427 = vmatpush1.bf16.msra.mxu0 0
    %1428 = vmatprep.subr.bf16.mxu0 0
    %1429 = vmatpush1.bf16.msra.mxu0 0
    %1430 = vmatprep.subr.bf16.mxu0 0
    %1431 = vmatpush1.bf16.msra.mxu0 0
    %1432 = vmatprep.subr.bf16.mxu0 0
    %1433 = vmatpush1.bf16.msra.mxu0 0
    %1434 = vmatprep.subr.bf16.mxu0 0
    %1435 = vmatpush1.bf16.msra.mxu0 0
    %1436 = vmatprep.subr.bf16.mxu0 0
    %1437 = vmatpush1.bf16.msra.mxu0 0
    %1438 = vmatprep.subr.bf16.mxu0 0
    %1439 = vmatpush1.bf16.msra.mxu0 0
    %1440 = vmatprep.subr.bf16.mxu0 0
    %1441 = vmatpush1.bf16.msra.mxu0 0
    %1442 = vmatprep.subr.bf16.mxu0 0
    %1443 = vmatpush1.bf16.msra.mxu0 0
    %1444 = vmatprep.subr.bf16.mxu0 0
    %1445 = vmatpush1.bf16.msra.mxu0 0
    %1446 = vmatprep.mubr.bf16.mxu0 0
    %1447 = vmatmul.mubr.bf16.gmra.mrb[0].mxu0 %v1330
    %v1448 = vpop.f32.mrb[0].mxu0
    %v1449 = vpop.f32.mrb[0].mxu0
    %v1450 = vpop.f32.mrb[0].mxu0
    %v1451 = vadd.f32 %v1407, %v1450
    %v1452 = vpop.f32.mrb[0].mxu0
    %1453 = vmatprep.mubr.bf16.mxu0 0
    %1454 = vmatmul.mubr.bf16.gmra.mrb[0].mxu0 %v1333
    %v1455 = vpop.f32.mrb[0].mxu0
    %v1456 = vpop.f32.mrb[0].mxu0
    %v1457 = vpop.f32.mrb[0].mxu0
    %v1458 = vadd.f32 %v1407, %v1457
    %v1459 = vpop.f32.mrb[0].mxu0
    %1460 = vdwg.mxu0
    %v1461 = vpack.c.bf16 %v1398, %v1397
    %v1462 = vpack.c.bf16 %v1400, %v1399
    %v1463 = vld [vmem:[%s1 + $0x88] sm:$0xf]
    %v1464 = vld [vmem:[%s1 + $0x8c] sm:$0xf]
    %v1467 = vrot.slane %v1461, 4
    %v1468 = vrot.slane %v1462, 4
    %v1469 = vsel %vm1157, %v1467, %v1468
    %v1472 = vsel %vm1162, 0, %v1467
    %v1474 = vsel %vm1184, %v1472, 0
    %v1475 = vsel %vm1185, %v1469, 0
    %v1476 = vld [vmem:[%s1 + $0x90] sm:$0xf]
    %v1477 = vld [vmem:[%s1 + $0x94] sm:$0xf]
    %v1478 = vrot.slane %v1461, 6
    %v1479 = vrot.slane %v1462, 6
    %v1480 = vsel %vm671, %v1478, %v1479
    %v1483 = vsel %vm676, 0, %v1478
    %v1485 = vsel %vm698, %v1483, 0
    %v1486 = vsel %vm699, %v1480, 0
    %v1489 = vunpack.c.l.b16 %v1476
    %v1490 = vunpack.c.l.b16 %v1477
    %v1491 = vpack.c.b16 %v1490, %v1489
    %v1494 = vsel %vm163, %v1485, 0
    %v1497 = vsel %vm163, %v1486, 0
    %1499 = vmatprep.subr.bf16.mxu0 0
    %1500 = vmatpush1.bf16.msra.mxu0 %v1491
    %1501 = vmatprep.subr.bf16.mxu0 0
    %1502 = vmatpush1.bf16.msra.mxu0 0
    %1503 = vmatprep.subr.bf16.mxu0 0
    %1504 = vmatpush1.bf16.msra.mxu0 0
    %1505 = vmatprep.subr.bf16.mxu0 0
    %1506 = vmatpush1.bf16.msra.mxu0 0
    %1507 = vmatprep.subr.bf16.mxu0 0
    %1508 = vmatpush1.bf16.msra.mxu0 0
    %1509 = vmatprep.subr.bf16.mxu0 0
    %1510 = vmatpush1.bf16.msra.mxu0 0
    %1511 = vmatprep.subr.bf16.mxu0 0
    %1512 = vmatpush1.bf16.msra.mxu0 0
    %1513 = vmatprep.subr.bf16.mxu0 0
    %1514 = vmatpush1.bf16.msra.mxu0 0
    %1515 = vmatprep.subr.bf16.mxu0 0
    %1516 = vmatpush1.bf16.msra.mxu0 0
    %1517 = vmatprep.subr.bf16.mxu0 0
    %1518 = vmatpush1.bf16.msra.mxu0 0
    %1519 = vmatprep.subr.bf16.mxu0 0
    %1520 = vmatpush1.bf16.msra.mxu0 0
    %1521 = vmatprep.subr.bf16.mxu0 0
    %1522 = vmatpush1.bf16.msra.mxu0 0
    %1523 = vmatprep.subr.bf16.mxu0 0
    %1524 = vmatpush1.bf16.msra.mxu0 0
    %1525 = vmatprep.subr.bf16.mxu0 0
    %1526 = vmatpush1.bf16.msra.mxu0 0
    %1527 = vmatprep.subr.bf16.mxu0 0
    %1528 = vmatpush1.bf16.msra.mxu0 0
    %1529 = vmatprep.subr.bf16.mxu0 0
    %1530 = vmatpush1.bf16.msra.mxu0 0
    %1531 = vmatprep.mubr.bf16.mxu0 0
    %1532 = vmatmul.mubr.bf16.gmra.mrb[0].mxu0 %v1494
    %v1533 = vpop.f32.mrb[0].mxu0
    %v1534 = vpop.f32.mrb[0].mxu0
    %v1535 = vpop.f32.mrb[0].mxu0
    %v1536 = vadd.f32 0.0, %v1535
    %v1537 = vpop.f32.mrb[0].mxu0
    %1538 = vmatprep.mubr.bf16.mxu0 0
    %1539 = vmatmul.mubr.bf16.gmra.mrb[0].mxu0 %v1497
    %v1540 = vpop.f32.mrb[0].mxu0
    %v1541 = vpop.f32.mrb[0].mxu0
    %v1542 = vpop.f32.mrb[0].mxu0
    %v1543 = vadd.f32 0.0, %v1542
    %v1544 = vpop.f32.mrb[0].mxu0
    %1545 = vdwg.mxu0
    %v1548 = vunpack.c.l.b16 %v1463
    %v1549 = vunpack.c.l.b16 %v1464
    %v1550 = vpack.c.b16 %v1549, %v1548
    %v1553 = vsel %vm163, %v1474, 0
    %v1556 = vsel %vm163, %v1475, 0
    %1558 = vmatprep.subr.bf16.mxu0 0
    %1559 = vmatpush1.bf16.msra.mxu0 %v1550
    %1560 = vmatprep.subr.bf16.mxu0 0
    %1561 = vmatpush1.bf16.msra.mxu0 0
    %1562 = vmatprep.subr.bf16.mxu0 0
    %1563 = vmatpush1.bf16.msra.mxu0 0
    %1564 = vmatprep.subr.bf16.mxu0 0
    %1565 = vmatpush1.bf16.msra.mxu0 0
    %1566 = vmatprep.subr.bf16.mxu0 0
    %1567 = vmatpush1.bf16.msra.mxu0 0
    %1568 = vmatprep.subr.bf16.mxu0 0
    %1569 = vmatpush1.bf16.msra.mxu0 0
    %1570 = vmatprep.subr.bf16.mxu0 0
    %1571 = vmatpush1.bf16.msra.mxu0 0
    %1572 = vmatprep.subr.bf16.mxu0 0
    %1573 = vmatpush1.bf16.msra.mxu0 0
    %1574 = vmatprep.subr.bf16.mxu0 0
    %1575 = vmatpush1.bf16.msra.mxu0 0
    %1576 = vmatprep.subr.bf16.mxu0 0
    %1577 = vmatpush1.bf16.msra.mxu0 0
    %1578 = vmatprep.subr.bf16.mxu0 0
    %1579 = vmatpush1.bf16.msra.mxu0 0
    %1580 = vmatprep.subr.bf16.mxu0 0
    %1581 = vmatpush1.bf16.msra.mxu0 0
    %1582 = vmatprep.subr.bf16.mxu0 0
    %1583 = vmatpush1.bf16.msra.mxu0 0
    %1584 = vmatprep.subr.bf16.mxu0 0
    %1585 = vmatpush1.bf16.msra.mxu0 0
    %1586 = vmatprep.subr.bf16.mxu0 0
    %1587 = vmatpush1.bf16.msra.mxu0 0
    %1588 = vmatprep.subr.bf16.mxu0 0
    %1589 = vmatpush1.bf16.msra.mxu0 0
    %1590 = vmatprep.mubr.bf16.mxu0 0
    %1591 = vmatmul.mubr.bf16.gmra.mrb[0].mxu0 %v1553
    %v1592 = vpop.f32.mrb[0].mxu0
    %v1593 = vpop.f32.mrb[0].mxu0
    %v1594 = vpop.f32.mrb[0].mxu0
    %v1595 = vadd.f32 %v1536, %v1594
    %v1596 = vpop.f32.mrb[0].mxu0
    %1597 = vmatprep.mubr.bf16.mxu0 0
    %1598 = vmatmul.mubr.bf16.gmra.mrb[0].mxu0 %v1556
    %v1599 = vpop.f32.mrb[0].mxu0
    %v1600 = vpop.f32.mrb[0].mxu0
    %v1601 = vpop.f32.mrb[0].mxu0
    %v1602 = vadd.f32 %v1543, %v1601
    %v1603 = vpop.f32.mrb[0].mxu0
    %1604 = vdwg.mxu0
    %v1605 = vld [vmem:[%s1 + $0x98] sm:$0xf]
    %v1606 = vld [vmem:[%s1 + $0x9c] sm:$0xf]
    %v1609 = vunpack.c.l.b16 %v1605
    %v1610 = vunpack.c.l.b16 %v1606
    %v1611 = vpack.c.b16 %v1610, %v1609
    %v1614 = vsel %vm163, %v1461, 0
    %v1617 = vsel %vm163, %v1462, 0
    %1619 = vmatprep.subr.bf16.mxu0 0
    %1620 = vmatpush1.bf16.msra.mxu0 %v1611
    %1621 = vmatprep.subr.bf16.mxu0 0
    %1622 = vmatpush1.bf16.msra.mxu0 0
    %1623 = vmatprep.subr.bf16.mxu0 0
    %1624 = vmatpush1.bf16.msra.mxu0 0
    %1625 = vmatprep.subr.bf16.mxu0 0
    %1626 = vmatpush1.bf16.msra.mxu0 0
    %1627 = vmatprep.subr.bf16.mxu0 0
    %1628 = vmatpush1.bf16.msra.mxu0 0
    %1629 = vmatprep.subr.bf16.mxu0 0
    %1630 = vmatpush1.bf16.msra.mxu0 0
    %1631 = vmatprep.subr.bf16.mxu0 0
    %1632 = vmatpush1.bf16.msra.mxu0 0
    %1633 = vmatprep.subr.bf16.mxu0 0
    %1634 = vmatpush1.bf16.msra.mxu0 0
    %1635 = vmatprep.subr.bf16.mxu0 0
    %1636 = vmatpush1.bf16.msra.mxu0 0
    %1637 = vmatprep.subr.bf16.mxu0 0
    %1638 = vmatpush1.bf16.msra.mxu0 0
    %1639 = vmatprep.subr.bf16.mxu0 0
    %1640 = vmatpush1.bf16.msra.mxu0 0
    %1641 = vmatprep.subr.bf16.mxu0 0
    %1642 = vmatpush1.bf16.msra.mxu0 0
    %1643 = vmatprep.subr.bf16.mxu0 0
    %1644 = vmatpush1.bf16.msra.mxu0 0
    %1645 = vmatprep.subr.bf16.mxu0 0
    %1646 = vmatpush1.bf16.msra.mxu0 0
    %1647 = vmatprep.subr.bf16.mxu0 0
    %1648 = vmatpush1.bf16.msra.mxu0 0
    %1649 = vmatprep.subr.bf16.mxu0 0
    %1650 = vmatpush1.bf16.msra.mxu0 0
    %1651 = vmatprep.mubr.bf16.mxu0 0
    %1652 = vmatmul.mubr.bf16.gmra.mrb[0].mxu0 %v1614
    %v1653 = vpop.f32.mrb[0].mxu0
    %v1654 = vpop.f32.mrb[0].mxu0
    %v1655 = vpop.f32.mrb[0].mxu0
    %v1656 = vadd.f32 0.0, %v1655
    %v1657 = vpop.f32.mrb[0].mxu0
    %1658 = vmatprep.mubr.bf16.mxu0 0
    %1659 = vmatmul.mubr.bf16.gmra.mrb[0].mxu0 %v1617
    %v1660 = vpop.f32.mrb[0].mxu0
    %v1661 = vpop.f32.mrb[0].mxu0
    %v1662 = vpop.f32.mrb[0].mxu0
    %v1663 = vadd.f32 0.0, %v1662
    %v1664 = vpop.f32.mrb[0].mxu0
    %1665 = vdwg.mxu0
    %v1666 = vadd.f32 %v1595, %v1656
    %v1667 = vadd.f32 %v1602, %v1663
    %v1668 = vld [vmem:[%s2 + $0x7] sm:$0x1]
    %v1669 = vlaneseq
    %v1670 = vshrl.u32 %v1669, 7
    %v1671 = vsub.s32 0, %v1670
    %v1672 = vrot.slane %v1668, %v1671
    %v1673 = vadd.f32 %v1666, %v1672
    %v1674 = vadd.f32 %v1667, %v1672
    %v1675 = vmax.f32 %v1673, 0.0
    %v1676 = vmax.f32 %v1674, 0.0
    %v1677 = vadd.f32 %v1675, %v1451
    %v1678 = vadd.f32 %v1676, %v1458
    %v1679 = vmax.f32 %v1677, 0.0
    %v1680 = vmax.f32 %v1678, 0.0
    %v1682 = vrot.slane %v1679, 7
    %v1685 = vrot.slane %v1680, 6
    %v1687 = vsel %vm86, %v1682, %v1685
    %v1688 = vpack.c.bf16 %v1687, %v1687
    %v1689 = vld [vmem:[%s1 + $0xa0] sm:$0xf]
    %v1690 = vld [vmem:[%s1 + $0xa4] sm:$0xf]
    %v1691 = vld [vmem:[%s2 + $0x8] sm:$0x1]
    %v1692 = vlaneseq
    %v1693 = vshrl.u32 %v1692, 7
    %v1694 = vsub.s32 0, %v1693
    %v1695 = vrot.slane %v1691, %v1694
    %v1698 = vunpack.c.l.b16 %v1689
    %v1699 = vunpack.c.l.b16 %v1690
    %v1700 = vpack.c.b16 %v1699, %v1698
    %v1703 = vsel %vm163, %v1688, 0
    %1705 = vmatprep.subr.bf16.mxu0 0
    %1706 = vmatpush1.bf16.msra.mxu0 %v1700
    %1707 = vmatprep.subr.bf16.mxu0 0
    %1708 = vmatpush1.bf16.msra.mxu0 0
    %1709 = vmatprep.subr.bf16.mxu0 0
    %1710 = vmatpush1.bf16.msra.mxu0 0
    %1711 = vmatprep.subr.bf16.mxu0 0
    %1712 = vmatpush1.bf16.msra.mxu0 0
    %1713 = vmatprep.subr.bf16.mxu0 0
    %1714 = vmatpush1.bf16.msra.mxu0 0
    %1715 = vmatprep.subr.bf16.mxu0 0
    %1716 = vmatpush1.bf16.msra.mxu0 0
    %1717 = vmatprep.subr.bf16.mxu0 0
    %1718 = vmatpush1.bf16.msra.mxu0 0
    %1719 = vmatprep.subr.bf16.mxu0 0
    %1720 = vmatpush1.bf16.msra.mxu0 0
    %1721 = vmatprep.subr.bf16.mxu0 0
    %1722 = vmatpush1.bf16.msra.mxu0 0
    %1723 = vmatprep.subr.bf16.mxu0 0
    %1724 = vmatpush1.bf16.msra.mxu0 0
    %1725 = vmatprep.subr.bf16.mxu0 0
    %1726 = vmatpush1.bf16.msra.mxu0 0
    %1727 = vmatprep.subr.bf16.mxu0 0
    %1728 = vmatpush1.bf16.msra.mxu0 0
    %1729 = vmatprep.subr.bf16.mxu0 0
    %1730 = vmatpush1.bf16.msra.mxu0 0
    %1731 = vmatprep.subr.bf16.mxu0 0
    %1732 = vmatpush1.bf16.msra.mxu0 0
    %1733 = vmatprep.subr.bf16.mxu0 0
    %1734 = vmatpush1.bf16.msra.mxu0 0
    %1735 = vmatprep.subr.bf16.mxu0 0
    %1736 = vmatpush1.bf16.msra.mxu0 0
    %1737 = vmatprep.mubr.bf16.mxu0 0
    %1738 = vmatmul.mubr.bf16.gmra.mrb[0].mxu0 %v1703
    %v1739 = vpop.f32.mrb[0].mxu0
    %v1740 = vadd.f32 %v1695, %v1739
    %v1741 = vpop.f32.mrb[0].mxu0
    %v1742 = vpop.f32.mrb[0].mxu0
    %v1743 = vpop.f32.mrb[0].mxu0
    %1744 = vdwg.mxu0
    %vm1745 = vcmask 17408
    %1746 = vst.msk [vmem:[#allocation2] sm:$0x3] %vm1745, %v1740
    // Predicated region
    $region14: #{tcn_forward.1} parent=1 // pred_check
      _
    $region15: #{tcn_forward.1} parent=1 // pred_check_branch
      %1748 = sbr.rel (0) target = $region17
    $region16: #{tcn_forward.1} parent=1 // pred_region
      %s1750 = ssub.s32 32, 32
      %1751 = vsyncadd [#allocation3], %s1750
      %s1753 = sshll.u32 [#allocation2], 4
      %s1754 = int_to_ptr.vmem [resolvable:$true] %s1753
      %1756 = dma.vmem_to_hbm [thread:$0]  %s1754, 32, %s3, [#allocation3]
    $region17: #{tcn_forward.1} parent=1 // pred_fallthru
      _
    // Predicated region
    $region18: #{tcn_forward.1} parent=1 // pred_check
      _
    $region19: #{tcn_forward.1} parent=1 // pred_check_branch
      %1758 = sbr.rel (0) target = $region21
    $region20: #{tcn_forward.1} parent=1 // pred_region
      %1759 = dma.done [#allocation3], 32
    $region21: #{tcn_forward.1} parent=1 // pred_fallthru
      _
    %1760 = vsyncpa [#allocation3], 1

</llo_original>
